<compile_context>
chip_gen: v7x
topology: tpu7x:2x2x1
jax: 0.10.0
libtpu: 0.0.40
codegen_flags: <defaults>
</compile_context>

<pallas_src>
import functools
import math

import jax
import jax.numpy as jnp
from jax import lax
from jax.experimental import pallas as pl
from jax.experimental.pallas import tpu as pltpu

EPS = 1e-5


def encoder_layer_kernel(*refs, num_heads, head_dim, need_weights):
    if need_weights:
        (x_ref,
         wq_ref, wk_ref, wv_ref, bq_ref, bk_ref, bv_ref,
         wo_ref, bo_ref,
         g1_ref, be1_ref,
         w1_ref, b1_ref, w2_ref, b2_ref,
         g2_ref, be2_ref,
         y_ref, att_ref,
         ctx_ref) = refs
    else:
        (x_ref,
         wq_ref, wk_ref, wv_ref, bq_ref, bk_ref, bv_ref,
         wo_ref, bo_ref,
         g1_ref, be1_ref,
         w1_ref, b1_ref, w2_ref, b2_ref,
         g2_ref, be2_ref,
         y_ref,
         ctx_ref) = refs
        att_ref = None

    TB, S, D = x_ref.shape
    R = TB * S                                   # flattened rows fed to the MXU

    x = x_ref[...].reshape(R, D)                 # (R, D) f32
    xb = x.astype(jnp.bfloat16)

    # --- self attention: QKV projections (bf16 operands, f32 accumulation) ---
    # NOTE: 1/sqrt(head_dim) is already folded into wq / bq by the wrapper.
    q = jnp.dot(xb, wq_ref[...], preferred_element_type=jnp.float32) + bq_ref[...]
    k = jnp.dot(xb, wk_ref[...], preferred_element_type=jnp.float32) + bk_ref[...]
    v = jnp.dot(xb, wv_ref[...], preferred_element_type=jnp.float32) + bv_ref[...]

    qb = q.reshape(TB, S, D).astype(jnp.bfloat16)
    kb = k.reshape(TB, S, D).astype(jnp.bfloat16)
    vb = v.reshape(TB, S, D).astype(jnp.bfloat16)

    att_acc = jnp.zeros((TB, S, S), jnp.float32) if need_weights else None

    for h in range(num_heads):                   # static loop over heads
        lo = h * head_dim
        hi = lo + head_dim
        # scores, batched over the TB batch tile
        s = jnp.einsum("bqd,bkd->bqk", qb[:, :, lo:hi], kb[:, :, lo:hi],
                       preferred_element_type=jnp.float32)
        s = s - jnp.max(s, axis=-1, keepdims=True)
        p = jnp.exp(s)
        p = p * pl.reciprocal(jnp.sum(p, axis=-1, keepdims=True), approx=True)
        if need_weights:
            att_acc = att_acc + p
        ctx_h = jnp.einsum("bqk,bkd->bqd", p.astype(jnp.bfloat16), vb[:, :, lo:hi],
                           preferred_element_type=jnp.float32)
        # write each head's context into the VMEM slab (no concatenate)
        ctx_ref[:, lo:hi] = ctx_h.reshape(R, head_dim).astype(jnp.bfloat16)

    if need_weights:
        att_ref[...] = (att_acc * (1.0 / num_heads)).astype(att_ref.dtype)

    attn_out = (jnp.dot(ctx_ref[...], wo_ref[...],
                        preferred_element_type=jnp.float32) + bo_ref[...])

    # --- residual + LayerNorm 1 (f32) ---
    h1 = x + attn_out
    mu1 = jnp.mean(h1, axis=-1, keepdims=True)
    var1 = jnp.mean(jnp.square(h1 - mu1), axis=-1, keepdims=True)
    h1n = (h1 - mu1) * lax.rsqrt(var1 + EPS) * g1_ref[...] + be1_ref[...]

    # --- feed-forward (relu), bf16 matmuls with f32 accumulation ---
    f = (jnp.dot(h1n.astype(jnp.bfloat16), w1_ref[...],
                 preferred_element_type=jnp.float32) + b1_ref[...])
    f = jnp.maximum(f, 0.0)
    f = (jnp.dot(f.astype(jnp.bfloat16), w2_ref[...],
                 preferred_element_type=jnp.float32) + b2_ref[...])

    # --- residual + LayerNorm 2 (f32) ---
    h2 = h1n + f
    mu2 = jnp.mean(h2, axis=-1, keepdims=True)
    var2 = jnp.mean(jnp.square(h2 - mu2), axis=-1, keepdims=True)
    y = (h2 - mu2) * lax.rsqrt(var2 + EPS) * g2_ref[...] + be2_ref[...]

    y_ref[...] = y.reshape(TB, S, D).astype(y_ref.dtype)


def make_layer_call(B, S, D, F, H, TB, *, need_weights):
    hd = D // H
    kernel = functools.partial(encoder_layer_kernel, num_heads=H, head_dim=hd,
                               need_weights=need_weights)

    def const_spec(shape):
        zeros = (0,) * len(shape)
        return pl.BlockSpec(shape, lambda b, _z=zeros: _z)

    in_specs = [
        pl.BlockSpec((TB, S, D), lambda b: (b, 0, 0)),                  # x  (f32)
        const_spec((D, D)), const_spec((D, D)), const_spec((D, D)),     # Wq Wk Wv (bf16)
        const_spec((1, D)), const_spec((1, D)), const_spec((1, D)),     # bq bk bv (f32)
        const_spec((D, D)), const_spec((1, D)),                         # Wo bo
        const_spec((1, D)), const_spec((1, D)),                         # norm1 gamma/beta
        const_spec((D, F)), const_spec((1, F)),                         # linear1
        const_spec((F, D)), const_spec((1, D)),                         # linear2
        const_spec((1, D)), const_spec((1, D)),                         # norm2 gamma/beta
    ]
    y_spec = pl.BlockSpec((TB, S, D), lambda b: (b, 0, 0))
    if need_weights:
        out_shape = (jax.ShapeDtypeStruct((B, S, D), jnp.float32),
                     jax.ShapeDtypeStruct((B, S, S), jnp.float32))
        out_specs = [y_spec, pl.BlockSpec((TB, S, S), lambda b: (b, 0, 0))]
    else:
        out_shape = jax.ShapeDtypeStruct((B, S, D), jnp.float32)
        out_specs = y_spec

    return pl.pallas_call(
        kernel,
        out_shape=out_shape,
        grid=(B // TB,),
        in_specs=in_specs,
        out_specs=out_specs,
        scratch_shapes=[pltpu.VMEM((TB * S, D), jnp.bfloat16)],   # per-head ctx slab
        compiler_params=pltpu.CompilerParams(
            dimension_semantics=("parallel",),
            vmem_limit_bytes=64 * 1024 * 1024,
        ),
    )


def init_layer_params(key, D, F):
    """PyTorch-style f32 parameters for one TransformerEncoderLayer."""
    ks = jax.random.split(key, 8)

    def xavier(k, shape):
        fan_in, fan_out = shape[0], shape[1]
        limit = (6.0 / (fan_in + fan_out)) ** 0.5
        return jax.random.uniform(k, shape, jnp.float32, -limit, limit)

    return dict(
        wq=xavier(ks[0], (D, D)), wk=xavier(ks[1], (D, D)), wv=xavier(ks[2], (D, D)),
        bq=jnp.zeros((1, D), jnp.float32),
        bk=jnp.zeros((1, D), jnp.float32),
        bv=jnp.zeros((1, D), jnp.float32),
        wo=xavier(ks[3], (D, D)), bo=jnp.zeros((1, D), jnp.float32),
        g1=jnp.ones((1, D), jnp.float32), be1=jnp.zeros((1, D), jnp.float32),
        w1=xavier(ks[4], (D, F)), b1=jax.random.normal(ks[5], (1, F), jnp.float32) * 0.01,
        w2=xavier(ks[6], (F, D)), b2=jax.random.normal(ks[7], (1, D), jnp.float32) * 0.01,
        g2=jnp.ones((1, D), jnp.float32), be2=jnp.zeros((1, D), jnp.float32),
    )


def prep_layer_params(p, num_heads):
    """Cast weights to bf16 for the MXU and fold 1/sqrt(head_dim) into Wq / bq."""
    D = p["wq"].shape[0]
    hd = D // num_heads
    scale = 1.0 / math.sqrt(hd)
    bf16, f32 = jnp.bfloat16, jnp.float32
    return dict(
        wq=(p["wq"] * scale).astype(bf16),
        wk=p["wk"].astype(bf16),
        wv=p["wv"].astype(bf16),
        bq=(p["bq"] * scale).astype(f32),
        bk=p["bk"].astype(f32),
        bv=p["bv"].astype(f32),
        wo=p["wo"].astype(bf16), bo=p["bo"].astype(f32),
        g1=p["g1"].astype(f32), be1=p["be1"].astype(f32),
        w1=p["w1"].astype(bf16), b1=p["b1"].astype(f32),
        w2=p["w2"].astype(bf16), b2=p["b2"].astype(f32),
        g2=p["g2"].astype(f32), be2=p["be2"].astype(f32),
    )


def _pick_batch_tile(B, S, target_rows=256):
    """Largest divisor of B such that TB*S does not (pointlessly) exceed ~target_rows."""
    tb = max(1, min(B, target_rows // max(S, 1)))
    while B % tb:
        tb -= 1
    return tb


def transformer_encoder(src, layer_params, *, num_heads):
    """src: (S, B, D) as in PyTorch.  Returns (output (S,B,D), att_weight (B,S,S))."""
    S, B, D = src.shape
    F = layer_params[0]["w1"].shape[1]
    TB = _pick_batch_tile(B, S)
    L = len(layer_params)

    call_last = make_layer_call(B, S, D, F, num_heads, TB, need_weights=True)
    call_mid = (make_layer_call(B, S, D, F, num_heads, TB, need_weights=False)
                if L > 1 else None)

    x = jnp.transpose(src, (1, 0, 2)).astype(jnp.float32)   # (B, S, D) for the kernel
    prepped = [prep_layer_params(p, num_heads) for p in layer_params]

    att = None
    for i, p in enumerate(prepped):
        args = (x,
                p["wq"], p["wk"], p["wv"], p["bq"], p["bk"], p["bv"],
                p["wo"], p["bo"], p["g1"], p["be1"],
                p["w1"], p["b1"], p["w2"], p["b2"], p["g2"], p["be2"])
        if i == L - 1:
            x, att = call_last(*args)            # only the last layer emits att weights
        else:
            x = call_mid(*args)
    return jnp.transpose(x, (1, 0, 2)), att


# ---------------- pure-JAX f32 reference for verification ----------------
def _ref_layer(x, p, H):
    B, S, D = x.shape
    hd = D // H
    q = x @ p["wq"] + p["bq"][0]
    k = x @ p["wk"] + p["bk"][0]
    v = x @ p["wv"] + p["bv"][0]

    def heads(t):
        return t.reshape(B, S, H, hd).transpose(0, 2, 1, 3)   # (B,H,S,hd)

    qh, kh, vh = heads(q) / (hd ** 0.5), heads(k), heads(v)
    s = jnp.einsum("bhqd,bhkd->bhqk", qh, kh)
    p_att = jax.nn.softmax(s, axis=-1)
    ctx = jnp.einsum("bhqk,bhkd->bhqd", p_att, vh).transpose(0, 2, 1, 3).reshape(B, S, D)
    att_avg = p_att.mean(axis=1)
    attn_out = ctx @ p["wo"] + p["bo"][0]

    def ln(h, g, b):
        mu = h.mean(-1, keepdims=True)
        var = ((h - mu) ** 2).mean(-1, keepdims=True)
        return (h - mu) / jnp.sqrt(var + EPS) * g[0] + b[0]

    h1 = ln(x + attn_out, p["g1"], p["be1"])
    f = jnp.maximum(h1 @ p["w1"] + p["b1"][0], 0.0) @ p["w2"] + p["b2"][0]
    return ln(h1 + f, p["g2"], p["be2"]), att_avg


def _ref_encoder(src, layer_params, H):
    x = jnp.transpose(src, (1, 0, 2))
    att = None
    for p in layer_params:
        x, att = _ref_layer(x, p, H)
    return jnp.transpose(x, (1, 0, 2)), att


if __name__ == "__main__":
    S, B, D, H, F, L = 8, 2, 32, 4, 64, 2

    key = jax.random.PRNGKey(0)
    src = jax.random.normal(key, (S, B, D), jnp.float32)   # PyTorch layout (seq, batch, d_model)
    params = [init_layer_params(jax.random.fold_in(key, i + 1), D, F) for i in range(L)]

    out, att = transformer_encoder(src, params, num_heads=H)
    out = jax.block_until_ready(out)
    att = jax.block_until_ready(att)

    ref_out, ref_att = _ref_encoder(src, params, H)
    assert out.shape == (S, B, D) and att.shape == (B, S, S)
    # bf16 matmul operands (f32 accumulation) -> relaxed tolerances vs. the f32 reference.
    assert jnp.allclose(out, ref_out, atol=5e-2, rtol=5e-2)
    assert jnp.allclose(att, ref_att, atol=5e-2, rtol=5e-2)

    print("KERNEL_OK")
</pallas_src>

<mosaic_0001>
module attributes {stable_mosaic.version = 11 : i64} {
  func.func @encoder_layer_kernel(%arg0: i32, %arg1: memref<2x8x32xf32, #tpu.memory_space<vmem>>, %arg2: memref<32x32xbf16, #tpu.memory_space<vmem>>, %arg3: memref<32x32xbf16, #tpu.memory_space<vmem>>, %arg4: memref<32x32xbf16, #tpu.memory_space<vmem>>, %arg5: memref<1x32xf32, #tpu.memory_space<vmem>>, %arg6: memref<1x32xf32, #tpu.memory_space<vmem>>, %arg7: memref<1x32xf32, #tpu.memory_space<vmem>>, %arg8: memref<32x32xbf16, #tpu.memory_space<vmem>>, %arg9: memref<1x32xf32, #tpu.memory_space<vmem>>, %arg10: memref<1x32xf32, #tpu.memory_space<vmem>>, %arg11: memref<1x32xf32, #tpu.memory_space<vmem>>, %arg12: memref<32x64xbf16, #tpu.memory_space<vmem>>, %arg13: memref<1x64xf32, #tpu.memory_space<vmem>>, %arg14: memref<64x32xbf16, #tpu.memory_space<vmem>>, %arg15: memref<1x32xf32, #tpu.memory_space<vmem>>, %arg16: memref<1x32xf32, #tpu.memory_space<vmem>>, %arg17: memref<1x32xf32, #tpu.memory_space<vmem>>, %arg18: memref<2x8x32xf32, #tpu.memory_space<vmem>>, %arg19: memref<16x32xbf16, #tpu.memory_space<vmem>>) attributes {dimension_semantics = [#tpu.dimension_semantics<parallel>], iteration_bounds = array<i64: 1>, scalar_prefetch = 0 : i64, scratch_operands = 1 : i64, tpu.core_type = #tpu.core_type<tc>, window_params = [{transform_indices = @transform_0, window_bounds = array<i64: 2, 8, 32>}, {pipeline_mode = #tpu.pipeline_mode<synchronous>, transform_indices = @transform_1, window_bounds = array<i64: 32, 32>}, {pipeline_mode = #tpu.pipeline_mode<synchronous>, transform_indices = @transform_2, window_bounds = array<i64: 32, 32>}, {pipeline_mode = #tpu.pipeline_mode<synchronous>, transform_indices = @transform_3, window_bounds = array<i64: 32, 32>}, {pipeline_mode = #tpu.pipeline_mode<synchronous>, transform_indices = @transform_4, window_bounds = array<i64: 1, 32>}, {pipeline_mode = #tpu.pipeline_mode<synchronous>, transform_indices = @transform_5, window_bounds = array<i64: 1, 32>}, {pipeline_mode = #tpu.pipeline_mode<synchronous>, transform_indices = @transform_6, window_bounds = array<i64: 1, 32>}, {pipeline_mode = #tpu.pipeline_mode<synchronous>, transform_indices = @transform_7, window_bounds = array<i64: 32, 32>}, {pipeline_mode = #tpu.pipeline_mode<synchronous>, transform_indices = @transform_8, window_bounds = array<i64: 1, 32>}, {pipeline_mode = #tpu.pipeline_mode<synchronous>, transform_indices = @transform_9, window_bounds = array<i64: 1, 32>}, {pipeline_mode = #tpu.pipeline_mode<synchronous>, transform_indices = @transform_10, window_bounds = array<i64: 1, 32>}, {pipeline_mode = #tpu.pipeline_mode<synchronous>, transform_indices = @transform_11, window_bounds = array<i64: 32, 64>}, {pipeline_mode = #tpu.pipeline_mode<synchronous>, transform_indices = @transform_12, window_bounds = array<i64: 1, 64>}, {pipeline_mode = #tpu.pipeline_mode<synchronous>, transform_indices = @transform_13, window_bounds = array<i64: 64, 32>}, {pipeline_mode = #tpu.pipeline_mode<synchronous>, transform_indices = @transform_14, window_bounds = array<i64: 1, 32>}, {pipeline_mode = #tpu.pipeline_mode<synchronous>, transform_indices = @transform_15, window_bounds = array<i64: 1, 32>}, {pipeline_mode = #tpu.pipeline_mode<synchronous>, transform_indices = @transform_16, window_bounds = array<i64: 1, 32>}, {transform_indices = @transform_17, window_bounds = array<i64: 2, 8, 32>}]} {
    %c0 = arith.constant 0 : index
    %c0_0 = arith.constant 0 : index
    %c0_1 = arith.constant 0 : index
    %0 = vector.load %arg1[%c0, %c0_0, %c0_1] : memref<2x8x32xf32, #tpu.memory_space<vmem>>, vector<2x8x32xf32>
    %1 = vector.shape_cast %0 : vector<2x8x32xf32> to vector<16x32xf32>
    %2 = arith.truncf %1 : vector<16x32xf32> to vector<16x32xbf16>
    %c0_2 = arith.constant 0 : index
    %c0_3 = arith.constant 0 : index
    %3 = vector.load %arg2[%c0_2, %c0_3] : memref<32x32xbf16, #tpu.memory_space<vmem>>, vector<32x32xbf16>
    %cst = arith.constant dense<0.000000e+00> : vector<16x32xf32>
    %4 = tpu.matmul %2, %3, %cst {dimension_numbers = #tpu.dot_dimension_numbers<[1], [0], [0], [1], [0, 0, 1, 1], [], []>} : vector<16x32xbf16>, vector<32x32xbf16>, vector<16x32xf32> -> vector<16x32xf32>
    %c0_4 = arith.constant 0 : index
    %c0_5 = arith.constant 0 : index
    %5 = vector.load %arg5[%c0_4, %c0_5] : memref<1x32xf32, #tpu.memory_space<vmem>>, vector<1x32xf32>
    %6 = vector.broadcast %5 : vector<1x32xf32> to vector<16x32xf32>
    %7 = arith.addf %4, %6 : vector<16x32xf32>
    %c0_6 = arith.constant 0 : index
    %c0_7 = arith.constant 0 : index
    %8 = vector.load %arg3[%c0_6, %c0_7] : memref<32x32xbf16, #tpu.memory_space<vmem>>, vector<32x32xbf16>
    %cst_8 = arith.constant dense<0.000000e+00> : vector<16x32xf32>
    %9 = tpu.matmul %2, %8, %cst_8 {dimension_numbers = #tpu.dot_dimension_numbers<[1], [0], [0], [1], [0, 0, 1, 1], [], []>} : vector<16x32xbf16>, vector<32x32xbf16>, vector<16x32xf32> -> vector<16x32xf32>
    %c0_9 = arith.constant 0 : index
    %c0_10 = arith.constant 0 : index
    %10 = vector.load %arg6[%c0_9, %c0_10] : memref<1x32xf32, #tpu.memory_space<vmem>>, vector<1x32xf32>
    %11 = vector.broadcast %10 : vector<1x32xf32> to vector<16x32xf32>
    %12 = arith.addf %9, %11 : vector<16x32xf32>
    %c0_11 = arith.constant 0 : index
    %c0_12 = arith.constant 0 : index
    %13 = vector.load %arg4[%c0_11, %c0_12] : memref<32x32xbf16, #tpu.memory_space<vmem>>, vector<32x32xbf16>
    %cst_13 = arith.constant dense<0.000000e+00> : vector<16x32xf32>
    %14 = tpu.matmul %2, %13, %cst_13 {dimension_numbers = #tpu.dot_dimension_numbers<[1], [0], [0], [1], [0, 0, 1, 1], [], []>} : vector<16x32xbf16>, vector<32x32xbf16>, vector<16x32xf32> -> vector<16x32xf32>
    %c0_14 = arith.constant 0 : index
    %c0_15 = arith.constant 0 : index
    %15 = vector.load %arg7[%c0_14, %c0_15] : memref<1x32xf32, #tpu.memory_space<vmem>>, vector<1x32xf32>
    %16 = vector.broadcast %15 : vector<1x32xf32> to vector<16x32xf32>
    %17 = arith.addf %14, %16 : vector<16x32xf32>
    %18 = vector.shape_cast %7 : vector<16x32xf32> to vector<2x8x32xf32>
    %19 = arith.truncf %18 : vector<2x8x32xf32> to vector<2x8x32xbf16>
    %20 = vector.shape_cast %12 : vector<16x32xf32> to vector<2x8x32xf32>
    %21 = arith.truncf %20 : vector<2x8x32xf32> to vector<2x8x32xbf16>
    %22 = vector.shape_cast %17 : vector<16x32xf32> to vector<2x8x32xf32>
    %23 = arith.truncf %22 : vector<2x8x32xf32> to vector<2x8x32xbf16>
    %24 = vector.extract_strided_slice %19 {offsets = [0, 0, 0], sizes = [2, 8, 8], strides = [1, 1, 1]} : vector<2x8x32xbf16> to vector<2x8x8xbf16>
    %25 = vector.extract_strided_slice %21 {offsets = [0, 0, 0], sizes = [2, 8, 8], strides = [1, 1, 1]} : vector<2x8x32xbf16> to vector<2x8x8xbf16>
    "tpu.trace_start"() <{level = 10 : i32, message = "bqd,bkd->bqk"}> : () -> ()
    %cst_16 = arith.constant dense<0.000000e+00> : vector<2x8x8xf32>
    %26 = tpu.matmul %24, %25, %cst_16 {dimension_numbers = #tpu.dot_dimension_numbers<[2], [2], [1], [1], [0, 0, 0, 1, 1, 1], [0], [0]>} : vector<2x8x8xbf16>, vector<2x8x8xbf16>, vector<2x8x8xf32> -> vector<2x8x8xf32>
    "tpu.trace_stop"() : () -> ()
    %cst_17 = arith.constant dense<0xFF800000> : vector<2x8xf32>
    %27 = vector.multi_reduction <maximumf>, %26, %cst_17 [2] : vector<2x8x8xf32> to vector<2x8xf32>
    %28 = vector.shape_cast %27 : vector<2x8xf32> to vector<2x8x1xf32>
    %29 = vector.broadcast %28 : vector<2x8x1xf32> to vector<2x8x8xf32>
    %30 = arith.subf %26, %29 : vector<2x8x8xf32>
    %31 = math.exp %30 : vector<2x8x8xf32>
    %cst_18 = arith.constant dense<0.000000e+00> : vector<2x8xf32>
    %32 = vector.multi_reduction <add>, %31, %cst_18 [2] : vector<2x8x8xf32> to vector<2x8xf32>
    %33 = vector.shape_cast %32 : vector<2x8xf32> to vector<2x8x1xf32>
    %34 = tpu.reciprocal %33 {approx = true} : vector<2x8x1xf32> -> vector<2x8x1xf32>
    %35 = vector.broadcast %34 : vector<2x8x1xf32> to vector<2x8x8xf32>
    %36 = arith.mulf %31, %35 : vector<2x8x8xf32>
    %37 = arith.truncf %36 : vector<2x8x8xf32> to vector<2x8x8xbf16>
    %38 = vector.extract_strided_slice %23 {offsets = [0, 0, 0], sizes = [2, 8, 8], strides = [1, 1, 1]} : vector<2x8x32xbf16> to vector<2x8x8xbf16>
    "tpu.trace_start"() <{level = 10 : i32, message = "bqk,bkd->bqd"}> : () -> ()
    %cst_19 = arith.constant dense<0.000000e+00> : vector<2x8x8xf32>
    %39 = tpu.matmul %37, %38, %cst_19 {dimension_numbers = #tpu.dot_dimension_numbers<[2], [1], [1], [2], [0, 0, 0, 1, 1, 2], [0], [0]>} : vector<2x8x8xbf16>, vector<2x8x8xbf16>, vector<2x8x8xf32> -> vector<2x8x8xf32>
    "tpu.trace_stop"() : () -> ()
    %40 = vector.shape_cast %39 : vector<2x8x8xf32> to vector<16x8xf32>
    %41 = arith.truncf %40 : vector<16x8xf32> to vector<16x8xbf16>
    %c0_20 = arith.constant 0 : index
    %c0_21 = arith.constant 0 : index
    %42 = vector.load %arg19[%c0_20, %c0_21] : memref<16x32xbf16, #tpu.memory_space<vmem>>, vector<16x8xbf16>
    tpu.vector_store %arg19[%c0_20, %c0_21], %41 {strides = array<i32>} : memref<16x32xbf16, #tpu.memory_space<vmem>>, vector<16x8xbf16>,
    %43 = vector.extract_strided_slice %19 {offsets = [0, 0, 8], sizes = [2, 8, 8], strides = [1, 1, 1]} : vector<2x8x32xbf16> to vector<2x8x8xbf16>
    %44 = vector.extract_strided_slice %21 {offsets = [0, 0, 8], sizes = [2, 8, 8], strides = [1, 1, 1]} : vector<2x8x32xbf16> to vector<2x8x8xbf16>
    "tpu.trace_start"() <{level = 10 : i32, message = "bqd,bkd->bqk"}> : () -> ()
    %cst_22 = arith.constant dense<0.000000e+00> : vector<2x8x8xf32>
    %45 = tpu.matmul %43, %44, %cst_22 {dimension_numbers = #tpu.dot_dimension_numbers<[2], [2], [1], [1], [0, 0, 0, 1, 1, 1], [0], [0]>} : vector<2x8x8xbf16>, vector<2x8x8xbf16>, vector<2x8x8xf32> -> vector<2x8x8xf32>
    "tpu.trace_stop"() : () -> ()
    %cst_23 = arith.constant dense<0xFF800000> : vector<2x8xf32>
    %46 = vector.multi_reduction <maximumf>, %45, %cst_23 [2] : vector<2x8x8xf32> to vector<2x8xf32>
    %47 = vector.shape_cast %46 : vector<2x8xf32> to vector<2x8x1xf32>
    %48 = vector.broadcast %47 : vector<2x8x1xf32> to vector<2x8x8xf32>
    %49 = arith.subf %45, %48 : vector<2x8x8xf32>
    %50 = math.exp %49 : vector<2x8x8xf32>
    %cst_24 = arith.constant dense<0.000000e+00> : vector<2x8xf32>
    %51 = vector.multi_reduction <add>, %50, %cst_24 [2] : vector<2x8x8xf32> to vector<2x8xf32>
    %52 = vector.shape_cast %51 : vector<2x8xf32> to vector<2x8x1xf32>
    %53 = tpu.reciprocal %52 {approx = true} : vector<2x8x1xf32> -> vector<2x8x1xf32>
    %54 = vector.broadcast %53 : vector<2x8x1xf32> to vector<2x8x8xf32>
    %55 = arith.mulf %50, %54 : vector<2x8x8xf32>
    %56 = arith.truncf %55 : vector<2x8x8xf32> to vector<2x8x8xbf16>
    %57 = vector.extract_strided_slice %23 {offsets = [0, 0, 8], sizes = [2, 8, 8], strides = [1, 1, 1]} : vector<2x8x32xbf16> to vector<2x8x8xbf16>
    "tpu.trace_start"() <{level = 10 : i32, message = "bqk,bkd->bqd"}> : () -> ()
    %cst_25 = arith.constant dense<0.000000e+00> : vector<2x8x8xf32>
    %58 = tpu.matmul %56, %57, %cst_25 {dimension_numbers = #tpu.dot_dimension_numbers<[2], [1], [1], [2], [0, 0, 0, 1, 1, 2], [0], [0]>} : vector<2x8x8xbf16>, vector<2x8x8xbf16>, vector<2x8x8xf32> -> vector<2x8x8xf32>
    "tpu.trace_stop"() : () -> ()
    %59 = vector.shape_cast %58 : vector<2x8x8xf32> to vector<16x8xf32>
    %60 = arith.truncf %59 : vector<16x8xf32> to vector<16x8xbf16>
    %c0_26 = arith.constant 0 : index
    %c8 = arith.constant 8 : index
    %61 = vector.load %arg19[%c0_26, %c8] : memref<16x32xbf16, #tpu.memory_space<vmem>>, vector<16x8xbf16>
    tpu.vector_store %arg19[%c0_26, %c8], %60 {strides = array<i32>} : memref<16x32xbf16, #tpu.memory_space<vmem>>, vector<16x8xbf16>,
    %62 = vector.extract_strided_slice %19 {offsets = [0, 0, 16], sizes = [2, 8, 8], strides = [1, 1, 1]} : vector<2x8x32xbf16> to vector<2x8x8xbf16>
    %63 = vector.extract_strided_slice %21 {offsets = [0, 0, 16], sizes = [2, 8, 8], strides = [1, 1, 1]} : vector<2x8x32xbf16> to vector<2x8x8xbf16>
    "tpu.trace_start"() <{level = 10 : i32, message = "bqd,bkd->bqk"}> : () -> ()
    %cst_27 = arith.constant dense<0.000000e+00> : vector<2x8x8xf32>
    %64 = tpu.matmul %62, %63, %cst_27 {dimension_numbers = #tpu.dot_dimension_numbers<[2], [2], [1], [1], [0, 0, 0, 1, 1, 1], [0], [0]>} : vector<2x8x8xbf16>, vector<2x8x8xbf16>, vector<2x8x8xf32> -> vector<2x8x8xf32>
    "tpu.trace_stop"() : () -> ()
    %cst_28 = arith.constant dense<0xFF800000> : vector<2x8xf32>
    %65 = vector.multi_reduction <maximumf>, %64, %cst_28 [2] : vector<2x8x8xf32> to vector<2x8xf32>
    %66 = vector.shape_cast %65 : vector<2x8xf32> to vector<2x8x1xf32>
    %67 = vector.broadcast %66 : vector<2x8x1xf32> to vector<2x8x8xf32>
    %68 = arith.subf %64, %67 : vector<2x8x8xf32>
    %69 = math.exp %68 : vector<2x8x8xf32>
    %cst_29 = arith.constant dense<0.000000e+00> : vector<2x8xf32>
    %70 = vector.multi_reduction <add>, %69, %cst_29 [2] : vector<2x8x8xf32> to vector<2x8xf32>
    %71 = vector.shape_cast %70 : vector<2x8xf32> to vector<2x8x1xf32>
    %72 = tpu.reciprocal %71 {approx = true} : vector<2x8x1xf32> -> vector<2x8x1xf32>
    %73 = vector.broadcast %72 : vector<2x8x1xf32> to vector<2x8x8xf32>
    %74 = arith.mulf %69, %73 : vector<2x8x8xf32>
    %75 = arith.truncf %74 : vector<2x8x8xf32> to vector<2x8x8xbf16>
    %76 = vector.extract_strided_slice %23 {offsets = [0, 0, 16], sizes = [2, 8, 8], strides = [1, 1, 1]} : vector<2x8x32xbf16> to vector<2x8x8xbf16>
    "tpu.trace_start"() <{level = 10 : i32, message = "bqk,bkd->bqd"}> : () -> ()
    %cst_30 = arith.constant dense<0.000000e+00> : vector<2x8x8xf32>
    %77 = tpu.matmul %75, %76, %cst_30 {dimension_numbers = #tpu.dot_dimension_numbers<[2], [1], [1], [2], [0, 0, 0, 1, 1, 2], [0], [0]>} : vector<2x8x8xbf16>, vector<2x8x8xbf16>, vector<2x8x8xf32> -> vector<2x8x8xf32>
    "tpu.trace_stop"() : () -> ()
    %78 = vector.shape_cast %77 : vector<2x8x8xf32> to vector<16x8xf32>
    %79 = arith.truncf %78 : vector<16x8xf32> to vector<16x8xbf16>
    %c0_31 = arith.constant 0 : index
    %c16 = arith.constant 16 : index
    %80 = vector.load %arg19[%c0_31, %c16] : memref<16x32xbf16, #tpu.memory_space<vmem>>, vector<16x8xbf16>
    tpu.vector_store %arg19[%c0_31, %c16], %79 {strides = array<i32>} : memref<16x32xbf16, #tpu.memory_space<vmem>>, vector<16x8xbf16>,
    %81 = vector.extract_strided_slice %19 {offsets = [0, 0, 24], sizes = [2, 8, 8], strides = [1, 1, 1]} : vector<2x8x32xbf16> to vector<2x8x8xbf16>
    %82 = vector.extract_strided_slice %21 {offsets = [0, 0, 24], sizes = [2, 8, 8], strides = [1, 1, 1]} : vector<2x8x32xbf16> to vector<2x8x8xbf16>
    "tpu.trace_start"() <{level = 10 : i32, message = "bqd,bkd->bqk"}> : () -> ()
    %cst_32 = arith.constant dense<0.000000e+00> : vector<2x8x8xf32>
    %83 = tpu.matmul %81, %82, %cst_32 {dimension_numbers = #tpu.dot_dimension_numbers<[2], [2], [1], [1], [0, 0, 0, 1, 1, 1], [0], [0]>} : vector<2x8x8xbf16>, vector<2x8x8xbf16>, vector<2x8x8xf32> -> vector<2x8x8xf32>
    "tpu.trace_stop"() : () -> ()
    %cst_33 = arith.constant dense<0xFF800000> : vector<2x8xf32>
    %84 = vector.multi_reduction <maximumf>, %83, %cst_33 [2] : vector<2x8x8xf32> to vector<2x8xf32>
    %85 = vector.shape_cast %84 : vector<2x8xf32> to vector<2x8x1xf32>
    %86 = vector.broadcast %85 : vector<2x8x1xf32> to vector<2x8x8xf32>
    %87 = arith.subf %83, %86 : vector<2x8x8xf32>
    %88 = math.exp %87 : vector<2x8x8xf32>
    %cst_34 = arith.constant dense<0.000000e+00> : vector<2x8xf32>
    %89 = vector.multi_reduction <add>, %88, %cst_34 [2] : vector<2x8x8xf32> to vector<2x8xf32>
    %90 = vector.shape_cast %89 : vector<2x8xf32> to vector<2x8x1xf32>
    %91 = tpu.reciprocal %90 {approx = true} : vector<2x8x1xf32> -> vector<2x8x1xf32>
    %92 = vector.broadcast %91 : vector<2x8x1xf32> to vector<2x8x8xf32>
    %93 = arith.mulf %88, %92 : vector<2x8x8xf32>
    %94 = arith.truncf %93 : vector<2x8x8xf32> to vector<2x8x8xbf16>
    %95 = vector.extract_strided_slice %23 {offsets = [0, 0, 24], sizes = [2, 8, 8], strides = [1, 1, 1]} : vector<2x8x32xbf16> to vector<2x8x8xbf16>
    "tpu.trace_start"() <{level = 10 : i32, message = "bqk,bkd->bqd"}> : () -> ()
    %cst_35 = arith.constant dense<0.000000e+00> : vector<2x8x8xf32>
    %96 = tpu.matmul %94, %95, %cst_35 {dimension_numbers = #tpu.dot_dimension_numbers<[2], [1], [1], [2], [0, 0, 0, 1, 1, 2], [0], [0]>} : vector<2x8x8xbf16>, vector<2x8x8xbf16>, vector<2x8x8xf32> -> vector<2x8x8xf32>
    "tpu.trace_stop"() : () -> ()
    %97 = vector.shape_cast %96 : vector<2x8x8xf32> to vector<16x8xf32>
    %98 = arith.truncf %97 : vector<16x8xf32> to vector<16x8xbf16>
    %c0_36 = arith.constant 0 : index
    %c24 = arith.constant 24 : index
    %99 = vector.load %arg19[%c0_36, %c24] : memref<16x32xbf16, #tpu.memory_space<vmem>>, vector<16x8xbf16>
    tpu.vector_store %arg19[%c0_36, %c24], %98 {strides = array<i32>} : memref<16x32xbf16, #tpu.memory_space<vmem>>, vector<16x8xbf16>,
    %c0_37 = arith.constant 0 : index
    %c0_38 = arith.constant 0 : index
    %100 = vector.load %arg19[%c0_37, %c0_38] : memref<16x32xbf16, #tpu.memory_space<vmem>>, vector<16x32xbf16>
    %c0_39 = arith.constant 0 : index
    %c0_40 = arith.constant 0 : index
    %101 = vector.load %arg8[%c0_39, %c0_40] : memref<32x32xbf16, #tpu.memory_space<vmem>>, vector<32x32xbf16>
    %cst_41 = arith.constant dense<0.000000e+00> : vector<16x32xf32>
    %102 = tpu.matmul %100, %101, %cst_41 {dimension_numbers = #tpu.dot_dimension_numbers<[1], [0], [0], [1], [0, 0, 1, 1], [], []>} : vector<16x32xbf16>, vector<32x32xbf16>, vector<16x32xf32> -> vector<16x32xf32>
    %c0_42 = arith.constant 0 : index
    %c0_43 = arith.constant 0 : index
    %103 = vector.load %arg9[%c0_42, %c0_43] : memref<1x32xf32, #tpu.memory_space<vmem>>, vector<1x32xf32>
    %104 = vector.broadcast %103 : vector<1x32xf32> to vector<16x32xf32>
    %105 = arith.addf %102, %104 : vector<16x32xf32>
    %106 = arith.addf %1, %105 : vector<16x32xf32>
    %cst_44 = arith.constant dense<0.000000e+00> : vector<16xf32>
    %107 = vector.multi_reduction <add>, %106, %cst_44 [1] : vector<16x32xf32> to vector<16xf32>
    %108 = vector.shape_cast %107 : vector<16xf32> to vector<16x1xf32>
    %cst_45 = arith.constant 3.200000e+01 : f32
    %109 = vector.broadcast %cst_45 : f32 to vector<16x1xf32>
    %110 = arith.divf %108, %109 : vector<16x1xf32>
    %111 = vector.broadcast %110 : vector<16x1xf32> to vector<16x32xf32>
    %112 = arith.subf %106, %111 : vector<16x32xf32>
    %113 = arith.mulf %112, %112 : vector<16x32xf32>
    %cst_46 = arith.constant dense<0.000000e+00> : vector<16xf32>
    %114 = vector.multi_reduction <add>, %113, %cst_46 [1] : vector<16x32xf32> to vector<16xf32>
    %115 = vector.shape_cast %114 : vector<16xf32> to vector<16x1xf32>
    %cst_47 = arith.constant 3.200000e+01 : f32
    %116 = vector.broadcast %cst_47 : f32 to vector<16x1xf32>
    %117 = arith.divf %115, %116 : vector<16x1xf32>
    %118 = vector.broadcast %110 : vector<16x1xf32> to vector<16x32xf32>
    %119 = arith.subf %106, %118 : vector<16x32xf32>
    %cst_48 = arith.constant 9.99999974E-6 : f32
    %120 = vector.broadcast %cst_48 : f32 to vector<16x1xf32>
    %121 = arith.addf %117, %120 : vector<16x1xf32>
    %122 = math.rsqrt %121 : vector<16x1xf32>
    %123 = vector.broadcast %122 : vector<16x1xf32> to vector<16x32xf32>
    %124 = arith.mulf %119, %123 : vector<16x32xf32>
    %c0_49 = arith.constant 0 : index
    %c0_50 = arith.constant 0 : index
    %125 = vector.load %arg10[%c0_49, %c0_50] : memref<1x32xf32, #tpu.memory_space<vmem>>, vector<1x32xf32>
    %126 = vector.broadcast %125 : vector<1x32xf32> to vector<16x32xf32>
    %127 = arith.mulf %124, %126 : vector<16x32xf32>
    %c0_51 = arith.constant 0 : index
    %c0_52 = arith.constant 0 : index
    %128 = vector.load %arg11[%c0_51, %c0_52] : memref<1x32xf32, #tpu.memory_space<vmem>>, vector<1x32xf32>
    %129 = vector.broadcast %128 : vector<1x32xf32> to vector<16x32xf32>
    %130 = arith.addf %127, %129 : vector<16x32xf32>
    %131 = arith.truncf %130 : vector<16x32xf32> to vector<16x32xbf16>
    %c0_53 = arith.constant 0 : index
    %c0_54 = arith.constant 0 : index
    %132 = vector.load %arg12[%c0_53, %c0_54] : memref<32x64xbf16, #tpu.memory_space<vmem>>, vector<32x64xbf16>
    %cst_55 = arith.constant dense<0.000000e+00> : vector<16x64xf32>
    %133 = tpu.matmul %131, %132, %cst_55 {dimension_numbers = #tpu.dot_dimension_numbers<[1], [0], [0], [1], [0, 0, 1, 1], [], []>} : vector<16x32xbf16>, vector<32x64xbf16>, vector<16x64xf32> -> vector<16x64xf32>
    %c0_56 = arith.constant 0 : index
    %c0_57 = arith.constant 0 : index
    %134 = vector.load %arg13[%c0_56, %c0_57] : memref<1x64xf32, #tpu.memory_space<vmem>>, vector<1x64xf32>
    %135 = vector.broadcast %134 : vector<1x64xf32> to vector<16x64xf32>
    %136 = arith.addf %133, %135 : vector<16x64xf32>
    %cst_58 = arith.constant 0.000000e+00 : f32
    %137 = vector.broadcast %cst_58 : f32 to vector<16x64xf32>
    %138 = arith.maximumf %136, %137 : vector<16x64xf32>
    %139 = arith.truncf %138 : vector<16x64xf32> to vector<16x64xbf16>
    %c0_59 = arith.constant 0 : index
    %c0_60 = arith.constant 0 : index
    %140 = vector.load %arg14[%c0_59, %c0_60] : memref<64x32xbf16, #tpu.memory_space<vmem>>, vector<64x32xbf16>
    %cst_61 = arith.constant dense<0.000000e+00> : vector<16x32xf32>
    %141 = tpu.matmul %139, %140, %cst_61 {dimension_numbers = #tpu.dot_dimension_numbers<[1], [0], [0], [1], [0, 0, 1, 1], [], []>} : vector<16x64xbf16>, vector<64x32xbf16>, vector<16x32xf32> -> vector<16x32xf32>
    %c0_62 = arith.constant 0 : index
    %c0_63 = arith.constant 0 : index
    %142 = vector.load %arg15[%c0_62, %c0_63] : memref<1x32xf32, #tpu.memory_space<vmem>>, vector<1x32xf32>
    %143 = vector.broadcast %142 : vector<1x32xf32> to vector<16x32xf32>
    %144 = arith.addf %141, %143 : vector<16x32xf32>
    %145 = arith.addf %130, %144 : vector<16x32xf32>
    %cst_64 = arith.constant dense<0.000000e+00> : vector<16xf32>
    %146 = vector.multi_reduction <add>, %145, %cst_64 [1] : vector<16x32xf32> to vector<16xf32>
    %147 = vector.shape_cast %146 : vector<16xf32> to vector<16x1xf32>
    %cst_65 = arith.constant 3.200000e+01 : f32
    %148 = vector.broadcast %cst_65 : f32 to vector<16x1xf32>
    %149 = arith.divf %147, %148 : vector<16x1xf32>
    %150 = vector.broadcast %149 : vector<16x1xf32> to vector<16x32xf32>
    %151 = arith.subf %145, %150 : vector<16x32xf32>
    %152 = arith.mulf %151, %151 : vector<16x32xf32>
    %cst_66 = arith.constant dense<0.000000e+00> : vector<16xf32>
    %153 = vector.multi_reduction <add>, %152, %cst_66 [1] : vector<16x32xf32> to vector<16xf32>
    %154 = vector.shape_cast %153 : vector<16xf32> to vector<16x1xf32>
    %cst_67 = arith.constant 3.200000e+01 : f32
    %155 = vector.broadcast %cst_67 : f32 to vector<16x1xf32>
    %156 = arith.divf %154, %155 : vector<16x1xf32>
    %157 = vector.broadcast %149 : vector<16x1xf32> to vector<16x32xf32>
    %158 = arith.subf %145, %157 : vector<16x32xf32>
    %cst_68 = arith.constant 9.99999974E-6 : f32
    %159 = vector.broadcast %cst_68 : f32 to vector<16x1xf32>
    %160 = arith.addf %156, %159 : vector<16x1xf32>
    %161 = math.rsqrt %160 : vector<16x1xf32>
    %162 = vector.broadcast %161 : vector<16x1xf32> to vector<16x32xf32>
    %163 = arith.mulf %158, %162 : vector<16x32xf32>
    %c0_69 = arith.constant 0 : index
    %c0_70 = arith.constant 0 : index
    %164 = vector.load %arg16[%c0_69, %c0_70] : memref<1x32xf32, #tpu.memory_space<vmem>>, vector<1x32xf32>
    %165 = vector.broadcast %164 : vector<1x32xf32> to vector<16x32xf32>
    %166 = arith.mulf %163, %165 : vector<16x32xf32>
    %c0_71 = arith.constant 0 : index
    %c0_72 = arith.constant 0 : index
    %167 = vector.load %arg17[%c0_71, %c0_72] : memref<1x32xf32, #tpu.memory_space<vmem>>, vector<1x32xf32>
    %168 = vector.broadcast %167 : vector<1x32xf32> to vector<16x32xf32>
    %169 = arith.addf %166, %168 : vector<16x32xf32>
    %170 = vector.shape_cast %169 : vector<16x32xf32> to vector<2x8x32xf32>
    %c0_73 = arith.constant 0 : index
    %c0_74 = arith.constant 0 : index
    %c0_75 = arith.constant 0 : index
    %171 = vector.load %arg18[%c0_73, %c0_74, %c0_75] : memref<2x8x32xf32, #tpu.memory_space<vmem>>, vector<2x8x32xf32>
    tpu.vector_store %arg18[%c0_73, %c0_74, %c0_75], %170 {strides = array<i32>} : memref<2x8x32xf32, #tpu.memory_space<vmem>>, vector<2x8x32xf32>,
    return
  }
  func.func @transform_0(%arg0: i32) -> (i32, i32, i32) {
    %c0_i32 = arith.constant 0 : i32
    %c0_i32_0 = arith.constant 0 : i32
    %c0_i32_1 = arith.constant 0 : i32
    return %arg0, %c0_i32, %c0_i32_0 : i32, i32, i32
  }
  func.func @transform_1(%arg0: i32) -> (i32, i32) {
    %c0_i32 = arith.constant 0 : i32
    %c0_i32_0 = arith.constant 0 : i32
    %c0_i32_1 = arith.constant 0 : i32
    return %c0_i32, %c0_i32_0 : i32, i32
  }
  func.func @transform_2(%arg0: i32) -> (i32, i32) {
    %c0_i32 = arith.constant 0 : i32
    %c0_i32_0 = arith.constant 0 : i32
    %c0_i32_1 = arith.constant 0 : i32
    return %c0_i32, %c0_i32_0 : i32, i32
  }
  func.func @transform_3(%arg0: i32) -> (i32, i32) {
    %c0_i32 = arith.constant 0 : i32
    %c0_i32_0 = arith.constant 0 : i32
    %c0_i32_1 = arith.constant 0 : i32
    return %c0_i32, %c0_i32_0 : i32, i32
  }
  func.func @transform_4(%arg0: i32) -> (i32, i32) {
    %c0_i32 = arith.constant 0 : i32
    %c0_i32_0 = arith.constant 0 : i32
    %c0_i32_1 = arith.constant 0 : i32
    return %c0_i32, %c0_i32_0 : i32, i32
  }
  func.func @transform_5(%arg0: i32) -> (i32, i32) {
    %c0_i32 = arith.constant 0 : i32
    %c0_i32_0 = arith.constant 0 : i32
    %c0_i32_1 = arith.constant 0 : i32
    return %c0_i32, %c0_i32_0 : i32, i32
  }
  func.func @transform_6(%arg0: i32) -> (i32, i32) {
    %c0_i32 = arith.constant 0 : i32
    %c0_i32_0 = arith.constant 0 : i32
    %c0_i32_1 = arith.constant 0 : i32
    return %c0_i32, %c0_i32_0 : i32, i32
  }
  func.func @transform_7(%arg0: i32) -> (i32, i32) {
    %c0_i32 = arith.constant 0 : i32
    %c0_i32_0 = arith.constant 0 : i32
    %c0_i32_1 = arith.constant 0 : i32
    return %c0_i32, %c0_i32_0 : i32, i32
  }
  func.func @transform_8(%arg0: i32) -> (i32, i32) {
    %c0_i32 = arith.constant 0 : i32
    %c0_i32_0 = arith.constant 0 : i32
    %c0_i32_1 = arith.constant 0 : i32
    return %c0_i32, %c0_i32_0 : i32, i32
  }
  func.func @transform_9(%arg0: i32) -> (i32, i32) {
    %c0_i32 = arith.constant 0 : i32
    %c0_i32_0 = arith.constant 0 : i32
    %c0_i32_1 = arith.constant 0 : i32
    return %c0_i32, %c0_i32_0 : i32, i32
  }
  func.func @transform_10(%arg0: i32) -> (i32, i32) {
    %c0_i32 = arith.constant 0 : i32
    %c0_i32_0 = arith.constant 0 : i32
    %c0_i32_1 = arith.constant 0 : i32
    return %c0_i32, %c0_i32_0 : i32, i32
  }
  func.func @transform_11(%arg0: i32) -> (i32, i32) {
    %c0_i32 = arith.constant 0 : i32
    %c0_i32_0 = arith.constant 0 : i32
    %c0_i32_1 = arith.constant 0 : i32
    return %c0_i32, %c0_i32_0 : i32, i32
  }
  func.func @transform_12(%arg0: i32) -> (i32, i32) {
    %c0_i32 = arith.constant 0 : i32
    %c0_i32_0 = arith.constant 0 : i32
    %c0_i32_1 = arith.constant 0 : i32
    return %c0_i32, %c0_i32_0 : i32, i32
  }
  func.func @transform_13(%arg0: i32) -> (i32, i32) {
    %c0_i32 = arith.constant 0 : i32
    %c0_i32_0 = arith.constant 0 : i32
    %c0_i32_1 = arith.constant 0 : i32
    return %c0_i32, %c0_i32_0 : i32, i32
  }
  func.func @transform_14(%arg0: i32) -> (i32, i32) {
    %c0_i32 = arith.constant 0 : i32
    %c0_i32_0 = arith.constant 0 : i32
    %c0_i32_1 = arith.constant 0 : i32
    return %c0_i32, %c0_i32_0 : i32, i32
  }
  func.func @transform_15(%arg0: i32) -> (i32, i32) {
    %c0_i32 = arith.constant 0 : i32
    %c0_i32_0 = arith.constant 0 : i32
    %c0_i32_1 = arith.constant 0 : i32
    return %c0_i32, %c0_i32_0 : i32, i32
  }
  func.func @transform_16(%arg0: i32) -> (i32, i32) {
    %c0_i32 = arith.constant 0 : i32
    %c0_i32_0 = arith.constant 0 : i32
    %c0_i32_1 = arith.constant 0 : i32
    return %c0_i32, %c0_i32_0 : i32, i32
  }
  func.func @transform_17(%arg0: i32) -> (i32, i32, i32) {
    %c0_i32 = arith.constant 0 : i32
    %c0_i32_0 = arith.constant 0 : i32
    %c0_i32_1 = arith.constant 0 : i32
    return %arg0, %c0_i32, %c0_i32_0 : i32, i32, i32
  }
}

</mosaic_0001>

<llo_original>
// kernel: tpu_custom_call.1
$region0: #{tpu_custom_call.1}
  #allocation0 [shape = 'u32[]', space=smem, size = 0x4, offset = 0x4, fixed_abs, tag = 'smem constant byte address 0x4 - core index']
  #allocation1 [shape = 'u32[144,128]{1,0:T(1,128)}', space=vmem, size = 0x12000, scoped, tag = 'internal scratch']
  #allocation2 [shape = 'bf16[16,32]{1,0:T(16,128)(2,1)}', space=vmem, size = 0x1000, scoped, tag = 'scratch operand']
  %s0 = inlined_call_operand.hbm [shape: f32[2,8,32], index: 0, kind: input, shape index: {}]
  %s1 = inlined_call_operand.hbm [shape: bf16[32,32], index: 1, kind: input, shape index: {}]
  %s2 = inlined_call_operand.hbm [shape: bf16[32,32], index: 2, kind: input, shape index: {}]
  %s3 = inlined_call_operand.hbm [shape: bf16[32,32], index: 3, kind: input, shape index: {}]
  %s4 = inlined_call_operand.hbm [shape: f32[1,32], index: 4, kind: input, shape index: {}]
  %s5 = inlined_call_operand.hbm [shape: f32[1,32], index: 5, kind: input, shape index: {}]
  %s6 = inlined_call_operand.hbm [shape: f32[1,32], index: 6, kind: input, shape index: {}]
  %s7 = inlined_call_operand.hbm [shape: bf16[32,32], index: 7, kind: input, shape index: {}]
  %s8 = inlined_call_operand.hbm [shape: f32[1,32], index: 8, kind: input, shape index: {}]
  %s9 = inlined_call_operand.hbm [shape: f32[1,32], index: 9, kind: input, shape index: {}]
  %s10 = inlined_call_operand.hbm [shape: f32[1,32], index: 10, kind: input, shape index: {}]
  %s11 = inlined_call_operand.hbm [shape: bf16[32,64], index: 11, kind: input, shape index: {}]
  %s12 = inlined_call_operand.hbm [shape: f32[1,64], index: 12, kind: input, shape index: {}]
  %s13 = inlined_call_operand.hbm [shape: bf16[64,32], index: 13, kind: input, shape index: {}]
  %s14 = inlined_call_operand.hbm [shape: f32[1,32], index: 14, kind: input, shape index: {}]
  %s15 = inlined_call_operand.hbm [shape: f32[1,32], index: 15, kind: input, shape index: {}]
  %s16 = inlined_call_operand.hbm [shape: f32[1,32], index: 16, kind: input, shape index: {}]
  %s17 = inlined_call_operand.hbm [shape: f32[2,8,32], index: 17, kind: output, shape index: {}]
  %s18 = sld [smem:[#allocation0]]
  $region146: #{tpu_custom_call.1} parent=0
    _
  %s20 = ssub.s32 1, %s18
  %s21 = scalar_select 0, %s20, %s18
  $region1: #{tpu_custom_call.1} parent=0
    #allocation3 [shape = 'u8[8192]{0}', space=vmem, size = 0x2000, scoped, tag = 'input window, operand 0, single buffered']
    #allocation4 [shape = 's32[1]{0}', space=sflag, size = 0x4, scoped, tag = 'scoped memory for tpu_custom_call.1']
    #allocation5 [shape = 's32[1]{0}', space=sflag, size = 0x4, scoped, tag = 'scoped memory for tpu_custom_call.1']
    #allocation6 [shape = 'u8[8192]{0}', space=vmem, size = 0x2000, scoped, tag = 'input window, operand 1, single buffered']
    #allocation7 [shape = 's32[1]{0}', space=sflag, size = 0x4, scoped, tag = 'scoped memory for tpu_custom_call.1']
    #allocation8 [shape = 'u8[8192]{0}', space=vmem, size = 0x2000, scoped, tag = 'input window, operand 2, single buffered']
    #allocation9 [shape = 'u8[8192]{0}', space=vmem, size = 0x2000, scoped, tag = 'input window, operand 3, single buffered']
    #allocation10 [shape = 's32[1]{0}', space=sflag, size = 0x4, scoped, tag = 'scoped memory for tpu_custom_call.1']
    #allocation11 [shape = 'u8[512]{0}', space=vmem, size = 0x400, scoped, tag = 'input window, operand 4, single buffered']
    #allocation12 [shape = 'u8[512]{0}', space=vmem, size = 0x400, scoped, tag = 'input window, operand 5, single buffered']
    #allocation13 [shape = 's32[1]{0}', space=sflag, size = 0x4, scoped, tag = 'scoped memory for tpu_custom_call.1']
    #allocation14 [shape = 'u8[512]{0}', space=vmem, size = 0x400, scoped, tag = 'input window, operand 6, single buffered']
    #allocation15 [shape = 'u8[8192]{0}', space=vmem, size = 0x2000, scoped, tag = 'input window, operand 7, single buffered']
    #allocation16 [shape = 's32[1]{0}', space=sflag, size = 0x4, scoped, tag = 'scoped memory for tpu_custom_call.1']
    #allocation17 [shape = 'u8[512]{0}', space=vmem, size = 0x400, scoped, tag = 'input window, operand 8, single buffered']
    #allocation18 [shape = 'u8[512]{0}', space=vmem, size = 0x400, scoped, tag = 'input window, operand 9, single buffered']
    #allocation19 [shape = 's32[1]{0}', space=sflag, size = 0x4, scoped, tag = 'scoped memory for tpu_custom_call.1']
    #allocation20 [shape = 'u8[512]{0}', space=vmem, size = 0x400, scoped, tag = 'input window, operand 10, single buffered']
    #allocation21 [shape = 'u8[8192]{0}', space=vmem, size = 0x2000, scoped, tag = 'input window, operand 11, single buffered']
    #allocation22 [shape = 's32[1]{0}', space=sflag, size = 0x4, scoped, tag = 'scoped memory for tpu_custom_call.1']
    #allocation23 [shape = 'u8[512]{0}', space=vmem, size = 0x400, scoped, tag = 'input window, operand 12, single buffered']
    #allocation24 [shape = 'u8[16384]{0}', space=vmem, size = 0x4000, scoped, tag = 'input window, operand 13, single buffered']
    #allocation25 [shape = 's32[1]{0}', space=sflag, size = 0x4, scoped, tag = 'scoped memory for tpu_custom_call.1']
    #allocation26 [shape = 'u8[512]{0}', space=vmem, size = 0x400, scoped, tag = 'input window, operand 14, single buffered']
    #allocation27 [shape = 'u8[512]{0}', space=vmem, size = 0x400, scoped, tag = 'input window, operand 15, single buffered']
    #allocation28 [shape = 's32[1]{0}', space=sflag, size = 0x4, scoped, tag = 'scoped memory for tpu_custom_call.1']
    #allocation29 [shape = 'u8[512]{0}', space=vmem, size = 0x400, scoped, tag = 'input window, operand 16, single buffered']
    #allocation30 [shape = 'u8[8192]{0}', space=vmem, size = 0x2000, scoped, tag = 'output window, operand 0, single buffered']
    %22 = vsyncpa [#allocation4], 0
    %23 = vsyncpa [#allocation7], 0
    %24 = vsyncpa [#allocation10], 0
    %25 = vsyncpa [#allocation13], 0
    %26 = vsyncpa [#allocation16], 0
    %27 = vsyncpa [#allocation19], 0
    %28 = vsyncpa [#allocation22], 0
    %29 = vsyncpa [#allocation25], 0
    %30 = vsyncpa [#allocation28], 0
    %31 = vsyncpa [#allocation5], 0
    // Predicated region
    $region2: #{tpu_custom_call.1} parent=1 // pred_check
      _
    $region3: #{tpu_custom_call.1} parent=1 // pred_check_branch
      %33 = sbr.rel (0) target = $region5
    $region4: #{tpu_custom_call.1} parent=1 // pred_region
      %s35 = ssub.s32 256, 256
      %36 = vsyncadd [#allocation4], %s35
      %s37 = sshll.u32 [#allocation3], 4
      %s38 = int_to_ptr.vmem [resolvable:$true] %s37
      %43 = dma.hbm_to_vmem [thread:$0]  %s0, 256, %s38, [#allocation4], 128, 128, 8
    $region5: #{tpu_custom_call.1} parent=1 // pred_fallthru
      _
    // Predicated region
    $region6: #{tpu_custom_call.1} parent=1 // pred_check
      _
    $region7: #{tpu_custom_call.1} parent=1 // pred_check_branch
      %45 = sbr.rel (0) target = $region9
    $region8: #{tpu_custom_call.1} parent=1 // pred_region
      %s47 = ssub.s32 256, 256
      %48 = vsyncadd [#allocation7], %s47
      %s49 = sshll.u32 [#allocation6], 4
      %s50 = int_to_ptr.vmem [resolvable:$true] %s49
      %55 = dma.hbm_to_vmem [thread:$0]  %s1, 256, %s50, [#allocation7], 64, 64, 4
    $region9: #{tpu_custom_call.1} parent=1 // pred_fallthru
      _
    // Predicated region
    $region10: #{tpu_custom_call.1} parent=1 // pred_check
      _
    $region11: #{tpu_custom_call.1} parent=1 // pred_check_branch
      %57 = sbr.rel (0) target = $region13
    $region12: #{tpu_custom_call.1} parent=1 // pred_region
      %s59 = ssub.s32 256, 256
      %60 = vsyncadd [#allocation7], %s59
      %s61 = sshll.u32 [#allocation8], 4
      %s62 = int_to_ptr.vmem [resolvable:$true] %s61
      %67 = dma.hbm_to_vmem [thread:$0]  %s2, 256, %s62, [#allocation7], 64, 64, 4
    $region13: #{tpu_custom_call.1} parent=1 // pred_fallthru
      _
    // Predicated region
    $region14: #{tpu_custom_call.1} parent=1 // pred_check
      _
    $region15: #{tpu_custom_call.1} parent=1 // pred_check_branch
      %69 = sbr.rel (0) target = $region17
    $region16: #{tpu_custom_call.1} parent=1 // pred_region
      %s71 = ssub.s32 256, 256
      %72 = vsyncadd [#allocation10], %s71
      %s73 = sshll.u32 [#allocation9], 4
      %s74 = int_to_ptr.vmem [resolvable:$true] %s73
      %79 = dma.hbm_to_vmem [thread:$0]  %s3, 256, %s74, [#allocation10], 64, 64, 4
    $region17: #{tpu_custom_call.1} parent=1 // pred_fallthru
      _
    // Predicated region
    $region18: #{tpu_custom_call.1} parent=1 // pred_check
      _
    $region19: #{tpu_custom_call.1} parent=1 // pred_check_branch
      %81 = sbr.rel (0) target = $region21
    $region20: #{tpu_custom_call.1} parent=1 // pred_region
      %s83 = ssub.s32 16, 16
      %84 = vsyncadd [#allocation10], %s83
      %s86 = sshll.u32 [#allocation11], 4
      %s87 = int_to_ptr.vmem [resolvable:$true] %s86
      %89 = dma.hbm_to_vmem [thread:$0]  %s4, 16, %s87, [#allocation10]
    $region21: #{tpu_custom_call.1} parent=1 // pred_fallthru
      _
    // Predicated region
    $region22: #{tpu_custom_call.1} parent=1 // pred_check
      _
    $region23: #{tpu_custom_call.1} parent=1 // pred_check_branch
      %91 = sbr.rel (0) target = $region25
    $region24: #{tpu_custom_call.1} parent=1 // pred_region
      %s93 = ssub.s32 16, 16
      %94 = vsyncadd [#allocation13], %s93
      %s96 = sshll.u32 [#allocation12], 4
      %s97 = int_to_ptr.vmem [resolvable:$true] %s96
      %99 = dma.hbm_to_vmem [thread:$0]  %s5, 16, %s97, [#allocation13]
    $region25: #{tpu_custom_call.1} parent=1 // pred_fallthru
      _
    // Predicated region
    $region26: #{tpu_custom_call.1} parent=1 // pred_check
      _
    $region27: #{tpu_custom_call.1} parent=1 // pred_check_branch
      %101 = sbr.rel (0) target = $region29
    $region28: #{tpu_custom_call.1} parent=1 // pred_region
      %s103 = ssub.s32 16, 16
      %104 = vsyncadd [#allocation13], %s103
      %s106 = sshll.u32 [#allocation14], 4
      %s107 = int_to_ptr.vmem [resolvable:$true] %s106
      %109 = dma.hbm_to_vmem [thread:$0]  %s6, 16, %s107, [#allocation13]
    $region29: #{tpu_custom_call.1} parent=1 // pred_fallthru
      _
    // Predicated region
    $region30: #{tpu_custom_call.1} parent=1 // pred_check
      _
    $region31: #{tpu_custom_call.1} parent=1 // pred_check_branch
      %111 = sbr.rel (0) target = $region33
    $region32: #{tpu_custom_call.1} parent=1 // pred_region
      %s113 = ssub.s32 256, 256
      %114 = vsyncadd [#allocation16], %s113
      %s115 = sshll.u32 [#allocation15], 4
      %s116 = int_to_ptr.vmem [resolvable:$true] %s115
      %121 = dma.hbm_to_vmem [thread:$0]  %s7, 256, %s116, [#allocation16], 64, 64, 4
    $region33: #{tpu_custom_call.1} parent=1 // pred_fallthru
      _
    // Predicated region
    $region34: #{tpu_custom_call.1} parent=1 // pred_check
      _
    $region35: #{tpu_custom_call.1} parent=1 // pred_check_branch
      %123 = sbr.rel (0) target = $region37
    $region36: #{tpu_custom_call.1} parent=1 // pred_region
      %s125 = ssub.s32 16, 16
      %126 = vsyncadd [#allocation16], %s125
      %s128 = sshll.u32 [#allocation17], 4
      %s129 = int_to_ptr.vmem [resolvable:$true] %s128
      %131 = dma.hbm_to_vmem [thread:$0]  %s8, 16, %s129, [#allocation16]
    $region37: #{tpu_custom_call.1} parent=1 // pred_fallthru
      _
    // Predicated region
    $region38: #{tpu_custom_call.1} parent=1 // pred_check
      _
    $region39: #{tpu_custom_call.1} parent=1 // pred_check_branch
      %133 = sbr.rel (0) target = $region41
    $region40: #{tpu_custom_call.1} parent=1 // pred_region
      %s135 = ssub.s32 16, 16
      %136 = vsyncadd [#allocation19], %s135
      %s138 = sshll.u32 [#allocation18], 4
      %s139 = int_to_ptr.vmem [resolvable:$true] %s138
      %141 = dma.hbm_to_vmem [thread:$0]  %s9, 16, %s139, [#allocation19]
    $region41: #{tpu_custom_call.1} parent=1 // pred_fallthru
      _
    // Predicated region
    $region42: #{tpu_custom_call.1} parent=1 // pred_check
      _
    $region43: #{tpu_custom_call.1} parent=1 // pred_check_branch
      %143 = sbr.rel (0) target = $region45
    $region44: #{tpu_custom_call.1} parent=1 // pred_region
      %s145 = ssub.s32 16, 16
      %146 = vsyncadd [#allocation19], %s145
      %s148 = sshll.u32 [#allocation20], 4
      %s149 = int_to_ptr.vmem [resolvable:$true] %s148
      %151 = dma.hbm_to_vmem [thread:$0]  %s10, 16, %s149, [#allocation19]
    $region45: #{tpu_custom_call.1} parent=1 // pred_fallthru
      _
    // Predicated region
    $region46: #{tpu_custom_call.1} parent=1 // pred_check
      _
    $region47: #{tpu_custom_call.1} parent=1 // pred_check_branch
      %153 = sbr.rel (0) target = $region49
    $region48: #{tpu_custom_call.1} parent=1 // pred_region
      %s155 = ssub.s32 256, 256
      %156 = vsyncadd [#allocation22], %s155
      %s157 = sshll.u32 [#allocation21], 4
      %s158 = int_to_ptr.vmem [resolvable:$true] %s157
      %163 = dma.hbm_to_vmem [thread:$0]  %s11, 256, %s158, [#allocation22], 64, 64, 4
    $region49: #{tpu_custom_call.1} parent=1 // pred_fallthru
      _
    // Predicated region
    $region50: #{tpu_custom_call.1} parent=1 // pred_check
      _
    $region51: #{tpu_custom_call.1} parent=1 // pred_check_branch
      %165 = sbr.rel (0) target = $region53
    $region52: #{tpu_custom_call.1} parent=1 // pred_region
      %s167 = ssub.s32 16, 16
      %168 = vsyncadd [#allocation22], %s167
      %s170 = sshll.u32 [#allocation23], 4
      %s171 = int_to_ptr.vmem [resolvable:$true] %s170
      %173 = dma.hbm_to_vmem [thread:$0]  %s12, 16, %s171, [#allocation22]
    $region53: #{tpu_custom_call.1} parent=1 // pred_fallthru
      _
    // Predicated region
    $region54: #{tpu_custom_call.1} parent=1 // pred_check
      _
    $region55: #{tpu_custom_call.1} parent=1 // pred_check_branch
      %175 = sbr.rel (0) target = $region57
    $region56: #{tpu_custom_call.1} parent=1 // pred_region
      %s177 = ssub.s32 512, 512
      %178 = vsyncadd [#allocation25], %s177
      %s179 = sshll.u32 [#allocation24], 4
      %s180 = int_to_ptr.vmem [resolvable:$true] %s179
      %185 = dma.hbm_to_vmem [thread:$0]  %s13, 512, %s180, [#allocation25], 64, 64, 4
    $region57: #{tpu_custom_call.1} parent=1 // pred_fallthru
      _
    // Predicated region
    $region58: #{tpu_custom_call.1} parent=1 // pred_check
      _
    $region59: #{tpu_custom_call.1} parent=1 // pred_check_branch
      %187 = sbr.rel (0) target = $region61
    $region60: #{tpu_custom_call.1} parent=1 // pred_region
      %s189 = ssub.s32 16, 16
      %190 = vsyncadd [#allocation25], %s189
      %s192 = sshll.u32 [#allocation26], 4
      %s193 = int_to_ptr.vmem [resolvable:$true] %s192
      %195 = dma.hbm_to_vmem [thread:$0]  %s14, 16, %s193, [#allocation25]
    $region61: #{tpu_custom_call.1} parent=1 // pred_fallthru
      _
    // Predicated region
    $region62: #{tpu_custom_call.1} parent=1 // pred_check
      _
    $region63: #{tpu_custom_call.1} parent=1 // pred_check_branch
      %197 = sbr.rel (0) target = $region65
    $region64: #{tpu_custom_call.1} parent=1 // pred_region
      %s199 = ssub.s32 16, 16
      %200 = vsyncadd [#allocation28], %s199
      %s202 = sshll.u32 [#allocation27], 4
      %s203 = int_to_ptr.vmem [resolvable:$true] %s202
      %205 = dma.hbm_to_vmem [thread:$0]  %s15, 16, %s203, [#allocation28]
    $region65: #{tpu_custom_call.1} parent=1 // pred_fallthru
      _
    // Predicated region
    $region66: #{tpu_custom_call.1} parent=1 // pred_check
      _
    $region67: #{tpu_custom_call.1} parent=1 // pred_check_branch
      %207 = sbr.rel (0) target = $region69
    $region68: #{tpu_custom_call.1} parent=1 // pred_region
      %s209 = ssub.s32 16, 16
      %210 = vsyncadd [#allocation28], %s209
      %s212 = sshll.u32 [#allocation29], 4
      %s213 = int_to_ptr.vmem [resolvable:$true] %s212
      %215 = dma.hbm_to_vmem [thread:$0]  %s16, 16, %s213, [#allocation28]
    $region69: #{tpu_custom_call.1} parent=1 // pred_fallthru
      _
    // Predicated region
    $region70: #{tpu_custom_call.1} parent=1 // pred_check
      _
    $region71: #{tpu_custom_call.1} parent=1 // pred_check_branch
      %217 = sbr.rel (0) target = $region73
    $region72: #{tpu_custom_call.1} parent=1 // pred_region
      %218 = dma.done [#allocation4], 256
    $region73: #{tpu_custom_call.1} parent=1 // pred_fallthru
      _
    // Predicated region
    $region74: #{tpu_custom_call.1} parent=1 // pred_check
      _
    $region75: #{tpu_custom_call.1} parent=1 // pred_check_branch
      %220 = sbr.rel (0) target = $region77
    $region76: #{tpu_custom_call.1} parent=1 // pred_region
      %221 = dma.done [#allocation7], 256
    $region77: #{tpu_custom_call.1} parent=1 // pred_fallthru
      _
    // Predicated region
    $region78: #{tpu_custom_call.1} parent=1 // pred_check
      _
    $region79: #{tpu_custom_call.1} parent=1 // pred_check_branch
      %223 = sbr.rel (0) target = $region81
    $region80: #{tpu_custom_call.1} parent=1 // pred_region
      %224 = dma.done [#allocation7], 256
    $region81: #{tpu_custom_call.1} parent=1 // pred_fallthru
      _
    // Predicated region
    $region82: #{tpu_custom_call.1} parent=1 // pred_check
      _
    $region83: #{tpu_custom_call.1} parent=1 // pred_check_branch
      %226 = sbr.rel (0) target = $region85
    $region84: #{tpu_custom_call.1} parent=1 // pred_region
      %227 = dma.done [#allocation10], 256
    $region85: #{tpu_custom_call.1} parent=1 // pred_fallthru
      _
    // Predicated region
    $region86: #{tpu_custom_call.1} parent=1 // pred_check
      _
    $region87: #{tpu_custom_call.1} parent=1 // pred_check_branch
      %229 = sbr.rel (0) target = $region89
    $region88: #{tpu_custom_call.1} parent=1 // pred_region
      %230 = dma.done [#allocation10], 16
    $region89: #{tpu_custom_call.1} parent=1 // pred_fallthru
      _
    // Predicated region
    $region90: #{tpu_custom_call.1} parent=1 // pred_check
      _
    $region91: #{tpu_custom_call.1} parent=1 // pred_check_branch
      %232 = sbr.rel (0) target = $region93
    $region92: #{tpu_custom_call.1} parent=1 // pred_region
      %233 = dma.done [#allocation13], 16
    $region93: #{tpu_custom_call.1} parent=1 // pred_fallthru
      _
    // Predicated region
    $region94: #{tpu_custom_call.1} parent=1 // pred_check
      _
    $region95: #{tpu_custom_call.1} parent=1 // pred_check_branch
      %235 = sbr.rel (0) target = $region97
    $region96: #{tpu_custom_call.1} parent=1 // pred_region
      %236 = dma.done [#allocation13], 16
    $region97: #{tpu_custom_call.1} parent=1 // pred_fallthru
      _
    // Predicated region
    $region98: #{tpu_custom_call.1} parent=1 // pred_check
      _
    $region99: #{tpu_custom_call.1} parent=1 // pred_check_branch
      %238 = sbr.rel (0) target = $region101
    $region100: #{tpu_custom_call.1} parent=1 // pred_region
      %239 = dma.done [#allocation16], 256
    $region101: #{tpu_custom_call.1} parent=1 // pred_fallthru
      _
    // Predicated region
    $region102: #{tpu_custom_call.1} parent=1 // pred_check
      _
    $region103: #{tpu_custom_call.1} parent=1 // pred_check_branch
      %241 = sbr.rel (0) target = $region105
    $region104: #{tpu_custom_call.1} parent=1 // pred_region
      %242 = dma.done [#allocation16], 16
    $region105: #{tpu_custom_call.1} parent=1 // pred_fallthru
      _
    // Predicated region
    $region106: #{tpu_custom_call.1} parent=1 // pred_check
      _
    $region107: #{tpu_custom_call.1} parent=1 // pred_check_branch
      %244 = sbr.rel (0) target = $region109
    $region108: #{tpu_custom_call.1} parent=1 // pred_region
      %245 = dma.done [#allocation19], 16
    $region109: #{tpu_custom_call.1} parent=1 // pred_fallthru
      _
    // Predicated region
    $region110: #{tpu_custom_call.1} parent=1 // pred_check
      _
    $region111: #{tpu_custom_call.1} parent=1 // pred_check_branch
      %247 = sbr.rel (0) target = $region113
    $region112: #{tpu_custom_call.1} parent=1 // pred_region
      %248 = dma.done [#allocation19], 16
    $region113: #{tpu_custom_call.1} parent=1 // pred_fallthru
      _
    // Predicated region
    $region114: #{tpu_custom_call.1} parent=1 // pred_check
      _
    $region115: #{tpu_custom_call.1} parent=1 // pred_check_branch
      %250 = sbr.rel (0) target = $region117
    $region116: #{tpu_custom_call.1} parent=1 // pred_region
      %251 = dma.done [#allocation22], 256
    $region117: #{tpu_custom_call.1} parent=1 // pred_fallthru
      _
    // Predicated region
    $region118: #{tpu_custom_call.1} parent=1 // pred_check
      _
    $region119: #{tpu_custom_call.1} parent=1 // pred_check_branch
      %253 = sbr.rel (0) target = $region121
    $region120: #{tpu_custom_call.1} parent=1 // pred_region
      %254 = dma.done [#allocation22], 16
    $region121: #{tpu_custom_call.1} parent=1 // pred_fallthru
      _
    // Predicated region
    $region122: #{tpu_custom_call.1} parent=1 // pred_check
      _
    $region123: #{tpu_custom_call.1} parent=1 // pred_check_branch
      %256 = sbr.rel (0) target = $region125
    $region124: #{tpu_custom_call.1} parent=1 // pred_region
      %257 = dma.done [#allocation25], 512
    $region125: #{tpu_custom_call.1} parent=1 // pred_fallthru
      _
    // Predicated region
    $region126: #{tpu_custom_call.1} parent=1 // pred_check
      _
    $region127: #{tpu_custom_call.1} parent=1 // pred_check_branch
      %259 = sbr.rel (0) target = $region129
    $region128: #{tpu_custom_call.1} parent=1 // pred_region
      %260 = dma.done [#allocation25], 16
    $region129: #{tpu_custom_call.1} parent=1 // pred_fallthru
      _
    // Predicated region
    $region130: #{tpu_custom_call.1} parent=1 // pred_check
      _
    $region131: #{tpu_custom_call.1} parent=1 // pred_check_branch
      %262 = sbr.rel (0) target = $region133
    $region132: #{tpu_custom_call.1} parent=1 // pred_region
      %263 = dma.done [#allocation28], 16
    $region133: #{tpu_custom_call.1} parent=1 // pred_fallthru
      _
    // Predicated region
    $region134: #{tpu_custom_call.1} parent=1 // pred_check
      _
    $region135: #{tpu_custom_call.1} parent=1 // pred_check_branch
      %265 = sbr.rel (0) target = $region137
    $region136: #{tpu_custom_call.1} parent=1 // pred_region
      %266 = dma.done [#allocation28], 16
    $region137: #{tpu_custom_call.1} parent=1 // pred_fallthru
      _
    %v268 = vld [vmem:[#allocation3] sm:$0xff]
    %v269 = vld [vmem:[#allocation3 + $0x8] sm:$0xff]
    %v270 = vpack.c.bf16 %v269, %v268
    %v271 = vld [vmem:[#allocation6] sm:$0xf]
    %v272 = vld [vmem:[#allocation6 + $0x4] sm:$0xf]
    %v273 = vld [vmem:[#allocation6 + $0x8] sm:$0xf]
    %v274 = vld [vmem:[#allocation6 + $0xc] sm:$0xf]
    %v275 = vld [vmem:[#allocation11] sm:$0x1]
    %v277 = vlaneseq
    %v278 = vshrl.u32 %v277, 7
    %v279 = vsub.s32 0, %v278
    %v280 = vrot.slane %v275, %v279
    %v286 = vunpack.c.l.b16 %v271
    %v287 = vunpack.c.l.b16 %v272
    %v288 = vunpack.c.l.b16 %v273
    %v289 = vunpack.c.l.b16 %v274
    %v290 = vpack.c.b16 %v287, %v286
    %v291 = vpack.c.b16 %v289, %v288
    %vm294 = vcmask 261120
    %v296 = vsel %vm294, %v270, 0
    %298 = vmatprep.subr.bf16.mxu0 0
    %299 = vmatpush1.bf16.msra.mxu0 %v290
    %300 = vmatprep.subr.bf16.mxu0 0
    %301 = vmatpush1.bf16.msra.mxu0 %v291
    %302 = vmatprep.subr.bf16.mxu0 0
    %303 = vmatpush1.bf16.msra.mxu0 0
    %304 = vmatprep.subr.bf16.mxu0 0
    %305 = vmatpush1.bf16.msra.mxu0 0
    %306 = vmatprep.subr.bf16.mxu0 0
    %307 = vmatpush1.bf16.msra.mxu0 0
    %308 = vmatprep.subr.bf16.mxu0 0
    %309 = vmatpush1.bf16.msra.mxu0 0
    %310 = vmatprep.subr.bf16.mxu0 0
    %311 = vmatpush1.bf16.msra.mxu0 0
    %312 = vmatprep.subr.bf16.mxu0 0
    %313 = vmatpush1.bf16.msra.mxu0 0
    %314 = vmatprep.subr.bf16.mxu0 0
    %315 = vmatpush1.bf16.msra.mxu0 0
    %316 = vmatprep.subr.bf16.mxu0 0
    %317 = vmatpush1.bf16.msra.mxu0 0
    %318 = vmatprep.subr.bf16.mxu0 0
    %319 = vmatpush1.bf16.msra.mxu0 0
    %320 = vmatprep.subr.bf16.mxu0 0
    %321 = vmatpush1.bf16.msra.mxu0 0
    %322 = vmatprep.subr.bf16.mxu0 0
    %323 = vmatpush1.bf16.msra.mxu0 0
    %324 = vmatprep.subr.bf16.mxu0 0
    %325 = vmatpush1.bf16.msra.mxu0 0
    %326 = vmatprep.subr.bf16.mxu0 0
    %327 = vmatpush1.bf16.msra.mxu0 0
    %328 = vmatprep.subr.bf16.mxu0 0
    %329 = vmatpush1.bf16.msra.mxu0 0
    %330 = vmatprep.mubr.bf16.mxu0 0
    %331 = vmatmul.mubr.bf16.gmra.mrb[0].mxu0 %v296
    %v332 = vpop.f32.mrb[0].mxu0
    %v333 = vadd.f32 %v280, %v332
    %v334 = vpop.f32.mrb[0].mxu0
    %v335 = vpop.f32.mrb[0].mxu0
    %v336 = vadd.f32 %v280, %v335
    %v337 = vpop.f32.mrb[0].mxu0
    %338 = vdwg.mxu0
    %v339 = vld [vmem:[#allocation8] sm:$0xf]
    %v340 = vld [vmem:[#allocation8 + $0x4] sm:$0xf]
    %v341 = vld [vmem:[#allocation8 + $0x8] sm:$0xf]
    %v342 = vld [vmem:[#allocation8 + $0xc] sm:$0xf]
    %v343 = vld [vmem:[#allocation12] sm:$0x1]
    %v345 = vlaneseq
    %v346 = vshrl.u32 %v345, 7
    %v347 = vsub.s32 0, %v346
    %v348 = vrot.slane %v343, %v347
    %v354 = vunpack.c.l.b16 %v339
    %v355 = vunpack.c.l.b16 %v340
    %v356 = vunpack.c.l.b16 %v341
    %v357 = vunpack.c.l.b16 %v342
    %v358 = vpack.c.b16 %v355, %v354
    %v359 = vpack.c.b16 %v357, %v356
    %362 = vmatprep.subr.bf16.mxu0 0
    %363 = vmatpush1.bf16.msra.mxu0 %v358
    %364 = vmatprep.subr.bf16.mxu0 0
    %365 = vmatpush1.bf16.msra.mxu0 %v359
    %366 = vmatprep.subr.bf16.mxu0 0
    %367 = vmatpush1.bf16.msra.mxu0 0
    %368 = vmatprep.subr.bf16.mxu0 0
    %369 = vmatpush1.bf16.msra.mxu0 0
    %370 = vmatprep.subr.bf16.mxu0 0
    %371 = vmatpush1.bf16.msra.mxu0 0
    %372 = vmatprep.subr.bf16.mxu0 0
    %373 = vmatpush1.bf16.msra.mxu0 0
    %374 = vmatprep.subr.bf16.mxu0 0
    %375 = vmatpush1.bf16.msra.mxu0 0
    %376 = vmatprep.subr.bf16.mxu0 0
    %377 = vmatpush1.bf16.msra.mxu0 0
    %378 = vmatprep.subr.bf16.mxu0 0
    %379 = vmatpush1.bf16.msra.mxu0 0
    %380 = vmatprep.subr.bf16.mxu0 0
    %381 = vmatpush1.bf16.msra.mxu0 0
    %382 = vmatprep.subr.bf16.mxu0 0
    %383 = vmatpush1.bf16.msra.mxu0 0
    %384 = vmatprep.subr.bf16.mxu0 0
    %385 = vmatpush1.bf16.msra.mxu0 0
    %386 = vmatprep.subr.bf16.mxu0 0
    %387 = vmatpush1.bf16.msra.mxu0 0
    %388 = vmatprep.subr.bf16.mxu0 0
    %389 = vmatpush1.bf16.msra.mxu0 0
    %390 = vmatprep.subr.bf16.mxu0 0
    %391 = vmatpush1.bf16.msra.mxu0 0
    %392 = vmatprep.subr.bf16.mxu0 0
    %393 = vmatpush1.bf16.msra.mxu0 0
    %394 = vmatprep.mubr.bf16.mxu0 0
    %395 = vmatmul.mubr.bf16.gmra.mrb[0].mxu0 %v296
    %v396 = vpop.f32.mrb[0].mxu0
    %v397 = vadd.f32 %v348, %v396
    %v398 = vpop.f32.mrb[0].mxu0
    %v399 = vpop.f32.mrb[0].mxu0
    %v400 = vadd.f32 %v348, %v399
    %v401 = vpop.f32.mrb[0].mxu0
    %402 = vdwg.mxu0
    %v403 = vld [vmem:[#allocation9] sm:$0xf]
    %v404 = vld [vmem:[#allocation9 + $0x4] sm:$0xf]
    %v405 = vld [vmem:[#allocation9 + $0x8] sm:$0xf]
    %v406 = vld [vmem:[#allocation9 + $0xc] sm:$0xf]
    %v407 = vld [vmem:[#allocation14] sm:$0x1]
    %v409 = vlaneseq
    %v410 = vshrl.u32 %v409, 7
    %v411 = vsub.s32 0, %v410
    %v412 = vrot.slane %v407, %v411
    %v418 = vunpack.c.l.b16 %v403
    %v419 = vunpack.c.l.b16 %v404
    %v420 = vunpack.c.l.b16 %v405
    %v421 = vunpack.c.l.b16 %v406
    %v422 = vpack.c.b16 %v419, %v418
    %v423 = vpack.c.b16 %v421, %v420
    %426 = vmatprep.subr.bf16.mxu0 0
    %427 = vmatpush1.bf16.msra.mxu0 %v422
    %428 = vmatprep.subr.bf16.mxu0 0
    %429 = vmatpush1.bf16.msra.mxu0 %v423
    %430 = vmatprep.subr.bf16.mxu0 0
    %431 = vmatpush1.bf16.msra.mxu0 0
    %432 = vmatprep.subr.bf16.mxu0 0
    %433 = vmatpush1.bf16.msra.mxu0 0
    %434 = vmatprep.subr.bf16.mxu0 0
    %435 = vmatpush1.bf16.msra.mxu0 0
    %436 = vmatprep.subr.bf16.mxu0 0
    %437 = vmatpush1.bf16.msra.mxu0 0
    %438 = vmatprep.subr.bf16.mxu0 0
    %439 = vmatpush1.bf16.msra.mxu0 0
    %440 = vmatprep.subr.bf16.mxu0 0
    %441 = vmatpush1.bf16.msra.mxu0 0
    %442 = vmatprep.subr.bf16.mxu0 0
    %443 = vmatpush1.bf16.msra.mxu0 0
    %444 = vmatprep.subr.bf16.mxu0 0
    %445 = vmatpush1.bf16.msra.mxu0 0
    %446 = vmatprep.subr.bf16.mxu0 0
    %447 = vmatpush1.bf16.msra.mxu0 0
    %448 = vmatprep.subr.bf16.mxu0 0
    %449 = vmatpush1.bf16.msra.mxu0 0
    %450 = vmatprep.subr.bf16.mxu0 0
    %451 = vmatpush1.bf16.msra.mxu0 0
    %452 = vmatprep.subr.bf16.mxu0 0
    %453 = vmatpush1.bf16.msra.mxu0 0
    %454 = vmatprep.subr.bf16.mxu0 0
    %455 = vmatpush1.bf16.msra.mxu0 0
    %456 = vmatprep.subr.bf16.mxu0 0
    %457 = vmatpush1.bf16.msra.mxu0 0
    %458 = vmatprep.mubr.bf16.mxu0 0
    %459 = vmatmul.mubr.bf16.gmra.mrb[0].mxu0 %v296
    %v460 = vpop.f32.mrb[0].mxu0
    %v461 = vadd.f32 %v412, %v460
    %v462 = vpop.f32.mrb[0].mxu0
    %v463 = vpop.f32.mrb[0].mxu0
    %v464 = vadd.f32 %v412, %v463
    %v465 = vpop.f32.mrb[0].mxu0
    %466 = vdwg.mxu0
    %v467 = vpack.c.bf16 %v333, %v333
    %v468 = vpack.c.bf16 %v336, %v336
    %v469 = vpack.c.bf16 %v397, %v397
    %v470 = vpack.c.bf16 %v400, %v400
    %v471 = vpack.c.bf16 %v461, %v461
    %v472 = vpack.c.bf16 %v464, %v464
    %vm473 = vcmask 64512
    %v475 = vsel %vm473, %v467, 0
    %v478 = vsel %vm473, %v469, 0
    %480 = vmatprep.subr.bf16.mxu0 0
    %481 = vmatpush1.bf16.xpose.msra.mxu0 %v478
    %482 = vmatprep.subr.bf16.mxu0 0
    %483 = vmatpush1.bf16.xpose.msra.mxu0 0
    %484 = vmatprep.subr.bf16.mxu0 0
    %485 = vmatpush1.bf16.xpose.msra.mxu0 0
    %486 = vmatprep.subr.bf16.mxu0 0
    %487 = vmatpush1.bf16.xpose.msra.mxu0 0
    %488 = vmatprep.subr.bf16.mxu0 0
    %489 = vmatpush1.bf16.xpose.msra.mxu0 0
    %490 = vmatprep.subr.bf16.mxu0 0
    %491 = vmatpush1.bf16.xpose.msra.mxu0 0
    %492 = vmatprep.subr.bf16.mxu0 0
    %493 = vmatpush1.bf16.xpose.msra.mxu0 0
    %494 = vmatprep.subr.bf16.mxu0 0
    %495 = vmatpush1.bf16.xpose.msra.mxu0 0
    %496 = vmatprep.subr.bf16.mxu0 0
    %497 = vmatpush1.bf16.xpose.msra.mxu0 0
    %498 = vmatprep.subr.bf16.mxu0 0
    %499 = vmatpush1.bf16.xpose.msra.mxu0 0
    %500 = vmatprep.subr.bf16.mxu0 0
    %501 = vmatpush1.bf16.xpose.msra.mxu0 0
    %502 = vmatprep.subr.bf16.mxu0 0
    %503 = vmatpush1.bf16.xpose.msra.mxu0 0
    %504 = vmatprep.subr.bf16.mxu0 0
    %505 = vmatpush1.bf16.xpose.msra.mxu0 0
    %506 = vmatprep.subr.bf16.mxu0 0
    %507 = vmatpush1.bf16.xpose.msra.mxu0 0
    %508 = vmatprep.subr.bf16.mxu0 0
    %509 = vmatpush1.bf16.xpose.msra.mxu0 0
    %510 = vmatprep.subr.bf16.mxu0 0
    %511 = vmatpush1.bf16.xpose.msra.mxu0 0
    %512 = vmatprep.mubr.bf16.mxu0 0
    %513 = vmatmul.mubr.bf16.gmra.mrb[0].mxu0 %v475
    %v514 = vpop.f32.mrb[0].mxu0
    %v515 = vadd.f32 0.0, %v514
    %v516 = vpop.f32.mrb[0].mxu0
    %v517 = vpop.f32.mrb[0].mxu0
    %v518 = vpop.f32.mrb[0].mxu0
    %519 = vdwg.mxu0
    %v521 = vsel %vm473, %v468, 0
    %v524 = vsel %vm473, %v470, 0
    %526 = vmatprep.subr.bf16.mxu0 0
    %527 = vmatpush1.bf16.xpose.msra.mxu0 %v524
    %528 = vmatprep.subr.bf16.mxu0 0
    %529 = vmatpush1.bf16.xpose.msra.mxu0 0
    %530 = vmatprep.subr.bf16.mxu0 0
    %531 = vmatpush1.bf16.xpose.msra.mxu0 0
    %532 = vmatprep.subr.bf16.mxu0 0
    %533 = vmatpush1.bf16.xpose.msra.mxu0 0
    %534 = vmatprep.subr.bf16.mxu0 0
    %535 = vmatpush1.bf16.xpose.msra.mxu0 0
    %536 = vmatprep.subr.bf16.mxu0 0
    %537 = vmatpush1.bf16.xpose.msra.mxu0 0
    %538 = vmatprep.subr.bf16.mxu0 0
    %539 = vmatpush1.bf16.xpose.msra.mxu0 0
    %540 = vmatprep.subr.bf16.mxu0 0
    %541 = vmatpush1.bf16.xpose.msra.mxu0 0
    %542 = vmatprep.subr.bf16.mxu0 0
    %543 = vmatpush1.bf16.xpose.msra.mxu0 0
    %544 = vmatprep.subr.bf16.mxu0 0
    %545 = vmatpush1.bf16.xpose.msra.mxu0 0
    %546 = vmatprep.subr.bf16.mxu0 0
    %547 = vmatpush1.bf16.xpose.msra.mxu0 0
    %548 = vmatprep.subr.bf16.mxu0 0
    %549 = vmatpush1.bf16.xpose.msra.mxu0 0
    %550 = vmatprep.subr.bf16.mxu0 0
    %551 = vmatpush1.bf16.xpose.msra.mxu0 0
    %552 = vmatprep.subr.bf16.mxu0 0
    %553 = vmatpush1.bf16.xpose.msra.mxu0 0
    %554 = vmatprep.subr.bf16.mxu0 0
    %555 = vmatpush1.bf16.xpose.msra.mxu0 0
    %556 = vmatprep.subr.bf16.mxu0 0
    %557 = vmatpush1.bf16.xpose.msra.mxu0 0
    %558 = vmatprep.mubr.bf16.mxu0 0
    %559 = vmatmul.mubr.bf16.gmra.mrb[0].mxu0 %v521
    %v560 = vpop.f32.mrb[0].mxu0
    %v561 = vadd.f32 0.0, %v560
    %v562 = vpop.f32.mrb[0].mxu0
    %v563 = vpop.f32.mrb[0].mxu0
    %v564 = vpop.f32.mrb[0].mxu0
    %565 = vdwg.mxu0
    %v566 = vsel %vm473, %v515, -inf
    %567 = vmax.xlane.f32.xlu0 %v566
    %v568 = vpop.xlane.xlu0 %567
    %v569 = vsel %vm473, %v561, -inf
    %570 = vmax.xlane.f32.xlu0 %v569
    %v571 = vpop.xlane.xlu0 %570
    %v572 = vsub.f32 %v515, %v568
    %v573 = vsub.f32 %v561, %v571
    %v574 = vmul.f32 %v572, 1.442695
    %v575 = vpow.pop %v574
    %v576 = vmul.f32 %v573, 1.442695
    %v577 = vpow.pop %v576
    %v578 = vsel %vm473, %v575, 0.0
    %579 = vadd.xlane.f32.xlu0 %v578
    %v580 = vpop.xlane.xlu0 %579
    %v581 = vsel %vm473, %v577, 0.0
    %582 = vadd.xlane.f32.xlu0 %v581
    %v583 = vpop.xlane.xlu0 %582
    %v584 = vrcp.pop %v580
    %v585 = vrcp.pop %v583
    %v586 = vmul.f32 %v575, %v584
    %v587 = vmul.f32 %v577, %v585
    %v588 = vpack.c.bf16 %v586, %v586
    %v589 = vpack.c.bf16 %v587, %v587
    %v591 = vsel %vm473, %v588, 0
    %vm593 = vcmask 1043456
    %v595 = vsel %vm593, %v471, 0
    %597 = vmatprep.subr.bf16.mxu0 0
    %598 = vmatpush1.bf16.msra.mxu0 %v595
    %599 = vmatprep.subr.bf16.mxu0 0
    %600 = vmatpush1.bf16.msra.mxu0 0
    %601 = vmatprep.subr.bf16.mxu0 0
    %602 = vmatpush1.bf16.msra.mxu0 0
    %603 = vmatprep.subr.bf16.mxu0 0
    %604 = vmatpush1.bf16.msra.mxu0 0
    %605 = vmatprep.subr.bf16.mxu0 0
    %606 = vmatpush1.bf16.msra.mxu0 0
    %607 = vmatprep.subr.bf16.mxu0 0
    %608 = vmatpush1.bf16.msra.mxu0 0
    %609 = vmatprep.subr.bf16.mxu0 0
    %610 = vmatpush1.bf16.msra.mxu0 0
    %611 = vmatprep.subr.bf16.mxu0 0
    %612 = vmatpush1.bf16.msra.mxu0 0
    %613 = vmatprep.subr.bf16.mxu0 0
    %614 = vmatpush1.bf16.msra.mxu0 0
    %615 = vmatprep.subr.bf16.mxu0 0
    %616 = vmatpush1.bf16.msra.mxu0 0
    %617 = vmatprep.subr.bf16.mxu0 0
    %618 = vmatpush1.bf16.msra.mxu0 0
    %619 = vmatprep.subr.bf16.mxu0 0
    %620 = vmatpush1.bf16.msra.mxu0 0
    %621 = vmatprep.subr.bf16.mxu0 0
    %622 = vmatpush1.bf16.msra.mxu0 0
    %623 = vmatprep.subr.bf16.mxu0 0
    %624 = vmatpush1.bf16.msra.mxu0 0
    %625 = vmatprep.subr.bf16.mxu0 0
    %626 = vmatpush1.bf16.msra.mxu0 0
    %627 = vmatprep.subr.bf16.mxu0 0
    %628 = vmatpush1.bf16.msra.mxu0 0
    %629 = vmatprep.mubr.bf16.mxu0 0
    %630 = vmatmul.mubr.bf16.gmra.mrb[0].mxu0 %v591
    %v631 = vpop.f32.mrb[0].mxu0
    %v632 = vadd.f32 0.0, %v631
    %v633 = vpop.f32.mrb[0].mxu0
    %v634 = vpop.f32.mrb[0].mxu0
    %v635 = vpop.f32.mrb[0].mxu0
    %636 = vdwg.mxu0
    %v638 = vsel %vm473, %v589, 0
    %v641 = vsel %vm593, %v472, 0
    %643 = vmatprep.subr.bf16.mxu0 0
    %644 = vmatpush1.bf16.msra.mxu0 %v641
    %645 = vmatprep.subr.bf16.mxu0 0
    %646 = vmatpush1.bf16.msra.mxu0 0
    %647 = vmatprep.subr.bf16.mxu0 0
    %648 = vmatpush1.bf16.msra.mxu0 0
    %649 = vmatprep.subr.bf16.mxu0 0
    %650 = vmatpush1.bf16.msra.mxu0 0
    %651 = vmatprep.subr.bf16.mxu0 0
    %652 = vmatpush1.bf16.msra.mxu0 0
    %653 = vmatprep.subr.bf16.mxu0 0
    %654 = vmatpush1.bf16.msra.mxu0 0
    %655 = vmatprep.subr.bf16.mxu0 0
    %656 = vmatpush1.bf16.msra.mxu0 0
    %657 = vmatprep.subr.bf16.mxu0 0
    %658 = vmatpush1.bf16.msra.mxu0 0
    %659 = vmatprep.subr.bf16.mxu0 0
    %660 = vmatpush1.bf16.msra.mxu0 0
    %661 = vmatprep.subr.bf16.mxu0 0
    %662 = vmatpush1.bf16.msra.mxu0 0
    %663 = vmatprep.subr.bf16.mxu0 0
    %664 = vmatpush1.bf16.msra.mxu0 0
    %665 = vmatprep.subr.bf16.mxu0 0
    %666 = vmatpush1.bf16.msra.mxu0 0
    %667 = vmatprep.subr.bf16.mxu0 0
    %668 = vmatpush1.bf16.msra.mxu0 0
    %669 = vmatprep.subr.bf16.mxu0 0
    %670 = vmatpush1.bf16.msra.mxu0 0
    %671 = vmatprep.subr.bf16.mxu0 0
    %672 = vmatpush1.bf16.msra.mxu0 0
    %673 = vmatprep.subr.bf16.mxu0 0
    %674 = vmatpush1.bf16.msra.mxu0 0
    %675 = vmatprep.mubr.bf16.mxu0 0
    %676 = vmatmul.mubr.bf16.gmra.mrb[0].mxu0 %v638
    %v677 = vpop.f32.mrb[0].mxu0
    %v678 = vadd.f32 0.0, %v677
    %v679 = vpop.f32.mrb[0].mxu0
    %v680 = vpop.f32.mrb[0].mxu0
    %v681 = vpop.f32.mrb[0].mxu0
    %682 = vdwg.mxu0
    %v683 = vpack.c.bf16 %v678, %v632
    %684 = vst.msk [vmem:[#allocation2] sm:$0xff] %vm473, %v683
    %686 = vrot.lane.b32.xlu0 %v467, 120
    %v687 = vpop.permute.xlu0 %686
    %689 = vrot.lane.b32.xlu0 %v469, 120
    %v690 = vpop.permute.xlu0 %689
    %v692 = vsel %vm473, %v687, 0
    %v695 = vsel %vm473, %v690, 0
    %697 = vmatprep.subr.bf16.mxu0 0
    %698 = vmatpush1.bf16.xpose.msra.mxu0 %v695
    %699 = vmatprep.subr.bf16.mxu0 0
    %700 = vmatpush1.bf16.xpose.msra.mxu0 0
    %701 = vmatprep.subr.bf16.mxu0 0
    %702 = vmatpush1.bf16.xpose.msra.mxu0 0
    %703 = vmatprep.subr.bf16.mxu0 0
    %704 = vmatpush1.bf16.xpose.msra.mxu0 0
    %705 = vmatprep.subr.bf16.mxu0 0
    %706 = vmatpush1.bf16.xpose.msra.mxu0 0
    %707 = vmatprep.subr.bf16.mxu0 0
    %708 = vmatpush1.bf16.xpose.msra.mxu0 0
    %709 = vmatprep.subr.bf16.mxu0 0
    %710 = vmatpush1.bf16.xpose.msra.mxu0 0
    %711 = vmatprep.subr.bf16.mxu0 0
    %712 = vmatpush1.bf16.xpose.msra.mxu0 0
    %713 = vmatprep.subr.bf16.mxu0 0
    %714 = vmatpush1.bf16.xpose.msra.mxu0 0
    %715 = vmatprep.subr.bf16.mxu0 0
    %716 = vmatpush1.bf16.xpose.msra.mxu0 0
    %717 = vmatprep.subr.bf16.mxu0 0
    %718 = vmatpush1.bf16.xpose.msra.mxu0 0
    %719 = vmatprep.subr.bf16.mxu0 0
    %720 = vmatpush1.bf16.xpose.msra.mxu0 0
    %721 = vmatprep.subr.bf16.mxu0 0
    %722 = vmatpush1.bf16.xpose.msra.mxu0 0
    %723 = vmatprep.subr.bf16.mxu0 0
    %724 = vmatpush1.bf16.xpose.msra.mxu0 0
    %725 = vmatprep.subr.bf16.mxu0 0
    %726 = vmatpush1.bf16.xpose.msra.mxu0 0
    %727 = vmatprep.subr.bf16.mxu0 0
    %728 = vmatpush1.bf16.xpose.msra.mxu0 0
    %729 = vmatprep.mubr.bf16.mxu0 0
    %730 = vmatmul.mubr.bf16.gmra.mrb[0].mxu0 %v692
    %v731 = vpop.f32.mrb[0].mxu0
    %v732 = vadd.f32 0.0, %v731
    %v733 = vpop.f32.mrb[0].mxu0
    %v734 = vpop.f32.mrb[0].mxu0
    %v735 = vpop.f32.mrb[0].mxu0
    %736 = vdwg.mxu0
    %738 = vrot.lane.b32.xlu0 %v468, 120
    %v739 = vpop.permute.xlu0 %738
    %741 = vrot.lane.b32.xlu0 %v470, 120
    %v742 = vpop.permute.xlu0 %741
    %v744 = vsel %vm473, %v739, 0
    %v747 = vsel %vm473, %v742, 0
    %749 = vmatprep.subr.bf16.mxu0 0
    %750 = vmatpush1.bf16.xpose.msra.mxu0 %v747
    %751 = vmatprep.subr.bf16.mxu0 0
    %752 = vmatpush1.bf16.xpose.msra.mxu0 0
    %753 = vmatprep.subr.bf16.mxu0 0
    %754 = vmatpush1.bf16.xpose.msra.mxu0 0
    %755 = vmatprep.subr.bf16.mxu0 0
    %756 = vmatpush1.bf16.xpose.msra.mxu0 0
    %757 = vmatprep.subr.bf16.mxu0 0
    %758 = vmatpush1.bf16.xpose.msra.mxu0 0
    %759 = vmatprep.subr.bf16.mxu0 0
    %760 = vmatpush1.bf16.xpose.msra.mxu0 0
    %761 = vmatprep.subr.bf16.mxu0 0
    %762 = vmatpush1.bf16.xpose.msra.mxu0 0
    %763 = vmatprep.subr.bf16.mxu0 0
    %764 = vmatpush1.bf16.xpose.msra.mxu0 0
    %765 = vmatprep.subr.bf16.mxu0 0
    %766 = vmatpush1.bf16.xpose.msra.mxu0 0
    %767 = vmatprep.subr.bf16.mxu0 0
    %768 = vmatpush1.bf16.xpose.msra.mxu0 0
    %769 = vmatprep.subr.bf16.mxu0 0
    %770 = vmatpush1.bf16.xpose.msra.mxu0 0
    %771 = vmatprep.subr.bf16.mxu0 0
    %772 = vmatpush1.bf16.xpose.msra.mxu0 0
    %773 = vmatprep.subr.bf16.mxu0 0
    %774 = vmatpush1.bf16.xpose.msra.mxu0 0
    %775 = vmatprep.subr.bf16.mxu0 0
    %776 = vmatpush1.bf16.xpose.msra.mxu0 0
    %777 = vmatprep.subr.bf16.mxu0 0
    %778 = vmatpush1.bf16.xpose.msra.mxu0 0
    %779 = vmatprep.subr.bf16.mxu0 0
    %780 = vmatpush1.bf16.xpose.msra.mxu0 0
    %781 = vmatprep.mubr.bf16.mxu0 0
    %782 = vmatmul.mubr.bf16.gmra.mrb[0].mxu0 %v744
    %v783 = vpop.f32.mrb[0].mxu0
    %v784 = vadd.f32 0.0, %v783
    %v785 = vpop.f32.mrb[0].mxu0
    %v786 = vpop.f32.mrb[0].mxu0
    %v787 = vpop.f32.mrb[0].mxu0
    %788 = vdwg.mxu0
    %v789 = vsel %vm473, %v732, -inf
    %790 = vmax.xlane.f32.xlu0 %v789
    %v791 = vpop.xlane.xlu0 %790
    %v792 = vsel %vm473, %v784, -inf
    %793 = vmax.xlane.f32.xlu0 %v792
    %v794 = vpop.xlane.xlu0 %793
    %v795 = vsub.f32 %v732, %v791
    %v796 = vsub.f32 %v784, %v794
    %v797 = vmul.f32 %v795, 1.442695
    %v798 = vpow.pop %v797
    %v799 = vmul.f32 %v796, 1.442695
    %v800 = vpow.pop %v799
    %v801 = vsel %vm473, %v798, 0.0
    %802 = vadd.xlane.f32.xlu0 %v801
    %v803 = vpop.xlane.xlu0 %802
    %v804 = vsel %vm473, %v800, 0.0
    %805 = vadd.xlane.f32.xlu0 %v804
    %v806 = vpop.xlane.xlu0 %805
    %v807 = vrcp.pop %v803
    %v808 = vrcp.pop %v806
    %v809 = vmul.f32 %v798, %v807
    %v810 = vmul.f32 %v800, %v808
    %v811 = vpack.c.bf16 %v809, %v809
    %v812 = vpack.c.bf16 %v810, %v810
    %814 = vrot.lane.b32.xlu0 %v471, 120
    %v815 = vpop.permute.xlu0 %814
    %v817 = vsel %vm473, %v811, 0
    %v820 = vsel %vm593, %v815, 0
    %822 = vmatprep.subr.bf16.mxu0 0
    %823 = vmatpush1.bf16.msra.mxu0 %v820
    %824 = vmatprep.subr.bf16.mxu0 0
    %825 = vmatpush1.bf16.msra.mxu0 0
    %826 = vmatprep.subr.bf16.mxu0 0
    %827 = vmatpush1.bf16.msra.mxu0 0
    %828 = vmatprep.subr.bf16.mxu0 0
    %829 = vmatpush1.bf16.msra.mxu0 0
    %830 = vmatprep.subr.bf16.mxu0 0
    %831 = vmatpush1.bf16.msra.mxu0 0
    %832 = vmatprep.subr.bf16.mxu0 0
    %833 = vmatpush1.bf16.msra.mxu0 0
    %834 = vmatprep.subr.bf16.mxu0 0
    %835 = vmatpush1.bf16.msra.mxu0 0
    %836 = vmatprep.subr.bf16.mxu0 0
    %837 = vmatpush1.bf16.msra.mxu0 0
    %838 = vmatprep.subr.bf16.mxu0 0
    %839 = vmatpush1.bf16.msra.mxu0 0
    %840 = vmatprep.subr.bf16.mxu0 0
    %841 = vmatpush1.bf16.msra.mxu0 0
    %842 = vmatprep.subr.bf16.mxu0 0
    %843 = vmatpush1.bf16.msra.mxu0 0
    %844 = vmatprep.subr.bf16.mxu0 0
    %845 = vmatpush1.bf16.msra.mxu0 0
    %846 = vmatprep.subr.bf16.mxu0 0
    %847 = vmatpush1.bf16.msra.mxu0 0
    %848 = vmatprep.subr.bf16.mxu0 0
    %849 = vmatpush1.bf16.msra.mxu0 0
    %850 = vmatprep.subr.bf16.mxu0 0
    %851 = vmatpush1.bf16.msra.mxu0 0
    %852 = vmatprep.subr.bf16.mxu0 0
    %853 = vmatpush1.bf16.msra.mxu0 0
    %854 = vmatprep.mubr.bf16.mxu0 0
    %855 = vmatmul.mubr.bf16.gmra.mrb[0].mxu0 %v817
    %v856 = vpop.f32.mrb[0].mxu0
    %v857 = vadd.f32 0.0, %v856
    %v858 = vpop.f32.mrb[0].mxu0
    %v859 = vpop.f32.mrb[0].mxu0
    %v860 = vpop.f32.mrb[0].mxu0
    %861 = vdwg.mxu0
    %863 = vrot.lane.b32.xlu0 %v472, 120
    %v864 = vpop.permute.xlu0 %863
    %v866 = vsel %vm473, %v812, 0
    %v869 = vsel %vm593, %v864, 0
    %871 = vmatprep.subr.bf16.mxu0 0
    %872 = vmatpush1.bf16.msra.mxu0 %v869
    %873 = vmatprep.subr.bf16.mxu0 0
    %874 = vmatpush1.bf16.msra.mxu0 0
    %875 = vmatprep.subr.bf16.mxu0 0
    %876 = vmatpush1.bf16.msra.mxu0 0
    %877 = vmatprep.subr.bf16.mxu0 0
    %878 = vmatpush1.bf16.msra.mxu0 0
    %879 = vmatprep.subr.bf16.mxu0 0
    %880 = vmatpush1.bf16.msra.mxu0 0
    %881 = vmatprep.subr.bf16.mxu0 0
    %882 = vmatpush1.bf16.msra.mxu0 0
    %883 = vmatprep.subr.bf16.mxu0 0
    %884 = vmatpush1.bf16.msra.mxu0 0
    %885 = vmatprep.subr.bf16.mxu0 0
    %886 = vmatpush1.bf16.msra.mxu0 0
    %887 = vmatprep.subr.bf16.mxu0 0
    %888 = vmatpush1.bf16.msra.mxu0 0
    %889 = vmatprep.subr.bf16.mxu0 0
    %890 = vmatpush1.bf16.msra.mxu0 0
    %891 = vmatprep.subr.bf16.mxu0 0
    %892 = vmatpush1.bf16.msra.mxu0 0
    %893 = vmatprep.subr.bf16.mxu0 0
    %894 = vmatpush1.bf16.msra.mxu0 0
    %895 = vmatprep.subr.bf16.mxu0 0
    %896 = vmatpush1.bf16.msra.mxu0 0
    %897 = vmatprep.subr.bf16.mxu0 0
    %898 = vmatpush1.bf16.msra.mxu0 0
    %899 = vmatprep.subr.bf16.mxu0 0
    %900 = vmatpush1.bf16.msra.mxu0 0
    %901 = vmatprep.subr.bf16.mxu0 0
    %902 = vmatpush1.bf16.msra.mxu0 0
    %903 = vmatprep.mubr.bf16.mxu0 0
    %904 = vmatmul.mubr.bf16.gmra.mrb[0].mxu0 %v866
    %v905 = vpop.f32.mrb[0].mxu0
    %v906 = vadd.f32 0.0, %v905
    %v907 = vpop.f32.mrb[0].mxu0
    %v908 = vpop.f32.mrb[0].mxu0
    %v909 = vpop.f32.mrb[0].mxu0
    %910 = vdwg.mxu0
    %v911 = vpack.c.bf16 %v906, %v857
    %913 = vrot.lane.b32.xlu0 %v911, 8
    %v914 = vpop.permute.xlu0 %913
    %vm916 = vcmask 130112
    %917 = vst.msk [vmem:[#allocation2] sm:$0xff] %vm916, %v914
    %918 = vrot.lane.b32.xlu0 %v467, 112
    %v919 = vpop.permute.xlu0 %918
    %920 = vrot.lane.b32.xlu0 %v469, 112
    %v921 = vpop.permute.xlu0 %920
    %v923 = vsel %vm473, %v919, 0
    %v926 = vsel %vm473, %v921, 0
    %928 = vmatprep.subr.bf16.mxu0 0
    %929 = vmatpush1.bf16.xpose.msra.mxu0 %v926
    %930 = vmatprep.subr.bf16.mxu0 0
    %931 = vmatpush1.bf16.xpose.msra.mxu0 0
    %932 = vmatprep.subr.bf16.mxu0 0
    %933 = vmatpush1.bf16.xpose.msra.mxu0 0
    %934 = vmatprep.subr.bf16.mxu0 0
    %935 = vmatpush1.bf16.xpose.msra.mxu0 0
    %936 = vmatprep.subr.bf16.mxu0 0
    %937 = vmatpush1.bf16.xpose.msra.mxu0 0
    %938 = vmatprep.subr.bf16.mxu0 0
    %939 = vmatpush1.bf16.xpose.msra.mxu0 0
    %940 = vmatprep.subr.bf16.mxu0 0
    %941 = vmatpush1.bf16.xpose.msra.mxu0 0
    %942 = vmatprep.subr.bf16.mxu0 0
    %943 = vmatpush1.bf16.xpose.msra.mxu0 0
    %944 = vmatprep.subr.bf16.mxu0 0
    %945 = vmatpush1.bf16.xpose.msra.mxu0 0
    %946 = vmatprep.subr.bf16.mxu0 0
    %947 = vmatpush1.bf16.xpose.msra.mxu0 0
    %948 = vmatprep.subr.bf16.mxu0 0
    %949 = vmatpush1.bf16.xpose.msra.mxu0 0
    %950 = vmatprep.subr.bf16.mxu0 0
    %951 = vmatpush1.bf16.xpose.msra.mxu0 0
    %952 = vmatprep.subr.bf16.mxu0 0
    %953 = vmatpush1.bf16.xpose.msra.mxu0 0
    %954 = vmatprep.subr.bf16.mxu0 0
    %955 = vmatpush1.bf16.xpose.msra.mxu0 0
    %956 = vmatprep.subr.bf16.mxu0 0
    %957 = vmatpush1.bf16.xpose.msra.mxu0 0
    %958 = vmatprep.subr.bf16.mxu0 0
    %959 = vmatpush1.bf16.xpose.msra.mxu0 0
    %960 = vmatprep.mubr.bf16.mxu0 0
    %961 = vmatmul.mubr.bf16.gmra.mrb[0].mxu0 %v923
    %v962 = vpop.f32.mrb[0].mxu0
    %v963 = vadd.f32 0.0, %v962
    %v964 = vpop.f32.mrb[0].mxu0
    %v965 = vpop.f32.mrb[0].mxu0
    %v966 = vpop.f32.mrb[0].mxu0
    %967 = vdwg.mxu0
    %968 = vrot.lane.b32.xlu0 %v468, 112
    %v969 = vpop.permute.xlu0 %968
    %970 = vrot.lane.b32.xlu0 %v470, 112
    %v971 = vpop.permute.xlu0 %970
    %v973 = vsel %vm473, %v969, 0
    %v976 = vsel %vm473, %v971, 0
    %978 = vmatprep.subr.bf16.mxu0 0
    %979 = vmatpush1.bf16.xpose.msra.mxu0 %v976
    %980 = vmatprep.subr.bf16.mxu0 0
    %981 = vmatpush1.bf16.xpose.msra.mxu0 0
    %982 = vmatprep.subr.bf16.mxu0 0
    %983 = vmatpush1.bf16.xpose.msra.mxu0 0
    %984 = vmatprep.subr.bf16.mxu0 0
    %985 = vmatpush1.bf16.xpose.msra.mxu0 0
    %986 = vmatprep.subr.bf16.mxu0 0
    %987 = vmatpush1.bf16.xpose.msra.mxu0 0
    %988 = vmatprep.subr.bf16.mxu0 0
    %989 = vmatpush1.bf16.xpose.msra.mxu0 0
    %990 = vmatprep.subr.bf16.mxu0 0
    %991 = vmatpush1.bf16.xpose.msra.mxu0 0
    %992 = vmatprep.subr.bf16.mxu0 0
    %993 = vmatpush1.bf16.xpose.msra.mxu0 0
    %994 = vmatprep.subr.bf16.mxu0 0
    %995 = vmatpush1.bf16.xpose.msra.mxu0 0
    %996 = vmatprep.subr.bf16.mxu0 0
    %997 = vmatpush1.bf16.xpose.msra.mxu0 0
    %998 = vmatprep.subr.bf16.mxu0 0
    %999 = vmatpush1.bf16.xpose.msra.mxu0 0
    %1000 = vmatprep.subr.bf16.mxu0 0
    %1001 = vmatpush1.bf16.xpose.msra.mxu0 0
    %1002 = vmatprep.subr.bf16.mxu0 0
    %1003 = vmatpush1.bf16.xpose.msra.mxu0 0
    %1004 = vmatprep.subr.bf16.mxu0 0
    %1005 = vmatpush1.bf16.xpose.msra.mxu0 0
    %1006 = vmatprep.subr.bf16.mxu0 0
    %1007 = vmatpush1.bf16.xpose.msra.mxu0 0
    %1008 = vmatprep.subr.bf16.mxu0 0
    %1009 = vmatpush1.bf16.xpose.msra.mxu0 0
    %1010 = vmatprep.mubr.bf16.mxu0 0
    %1011 = vmatmul.mubr.bf16.gmra.mrb[0].mxu0 %v973
    %v1012 = vpop.f32.mrb[0].mxu0
    %v1013 = vadd.f32 0.0, %v1012
    %v1014 = vpop.f32.mrb[0].mxu0
    %v1015 = vpop.f32.mrb[0].mxu0
    %v1016 = vpop.f32.mrb[0].mxu0
    %1017 = vdwg.mxu0
    %v1018 = vsel %vm473, %v963, -inf
    %1019 = vmax.xlane.f32.xlu0 %v1018
    %v1020 = vpop.xlane.xlu0 %1019
    %v1021 = vsel %vm473, %v1013, -inf
    %1022 = vmax.xlane.f32.xlu0 %v1021
    %v1023 = vpop.xlane.xlu0 %1022
    %v1024 = vsub.f32 %v963, %v1020
    %v1025 = vsub.f32 %v1013, %v1023
    %v1026 = vmul.f32 %v1024, 1.442695
    %v1027 = vpow.pop %v1026
    %v1028 = vmul.f32 %v1025, 1.442695
    %v1029 = vpow.pop %v1028
    %v1030 = vsel %vm473, %v1027, 0.0
    %1031 = vadd.xlane.f32.xlu0 %v1030
    %v1032 = vpop.xlane.xlu0 %1031
    %v1033 = vsel %vm473, %v1029, 0.0
    %1034 = vadd.xlane.f32.xlu0 %v1033
    %v1035 = vpop.xlane.xlu0 %1034
    %v1036 = vrcp.pop %v1032
    %v1037 = vrcp.pop %v1035
    %v1038 = vmul.f32 %v1027, %v1036
    %v1039 = vmul.f32 %v1029, %v1037
    %v1040 = vpack.c.bf16 %v1038, %v1038
    %v1041 = vpack.c.bf16 %v1039, %v1039
    %1042 = vrot.lane.b32.xlu0 %v471, 112
    %v1043 = vpop.permute.xlu0 %1042
    %v1045 = vsel %vm473, %v1040, 0
    %v1048 = vsel %vm593, %v1043, 0
    %1050 = vmatprep.subr.bf16.mxu0 0
    %1051 = vmatpush1.bf16.msra.mxu0 %v1048
    %1052 = vmatprep.subr.bf16.mxu0 0
    %1053 = vmatpush1.bf16.msra.mxu0 0
    %1054 = vmatprep.subr.bf16.mxu0 0
    %1055 = vmatpush1.bf16.msra.mxu0 0
    %1056 = vmatprep.subr.bf16.mxu0 0
    %1057 = vmatpush1.bf16.msra.mxu0 0
    %1058 = vmatprep.subr.bf16.mxu0 0
    %1059 = vmatpush1.bf16.msra.mxu0 0
    %1060 = vmatprep.subr.bf16.mxu0 0
    %1061 = vmatpush1.bf16.msra.mxu0 0
    %1062 = vmatprep.subr.bf16.mxu0 0
    %1063 = vmatpush1.bf16.msra.mxu0 0
    %1064 = vmatprep.subr.bf16.mxu0 0
    %1065 = vmatpush1.bf16.msra.mxu0 0
    %1066 = vmatprep.subr.bf16.mxu0 0
    %1067 = vmatpush1.bf16.msra.mxu0 0
    %1068 = vmatprep.subr.bf16.mxu0 0
    %1069 = vmatpush1.bf16.msra.mxu0 0
    %1070 = vmatprep.subr.bf16.mxu0 0
    %1071 = vmatpush1.bf16.msra.mxu0 0
    %1072 = vmatprep.subr.bf16.mxu0 0
    %1073 = vmatpush1.bf16.msra.mxu0 0
    %1074 = vmatprep.subr.bf16.mxu0 0
    %1075 = vmatpush1.bf16.msra.mxu0 0
    %1076 = vmatprep.subr.bf16.mxu0 0
    %1077 = vmatpush1.bf16.msra.mxu0 0
    %1078 = vmatprep.subr.bf16.mxu0 0
    %1079 = vmatpush1.bf16.msra.mxu0 0
    %1080 = vmatprep.subr.bf16.mxu0 0
    %1081 = vmatpush1.bf16.msra.mxu0 0
    %1082 = vmatprep.mubr.bf16.mxu0 0
    %1083 = vmatmul.mubr.bf16.gmra.mrb[0].mxu0 %v1045
    %v1084 = vpop.f32.mrb[0].mxu0
    %v1085 = vadd.f32 0.0, %v1084
    %v1086 = vpop.f32.mrb[0].mxu0
    %v1087 = vpop.f32.mrb[0].mxu0
    %v1088 = vpop.f32.mrb[0].mxu0
    %1089 = vdwg.mxu0
    %1090 = vrot.lane.b32.xlu0 %v472, 112
    %v1091 = vpop.permute.xlu0 %1090
    %v1093 = vsel %vm473, %v1041, 0
    %v1096 = vsel %vm593, %v1091, 0
    %1098 = vmatprep.subr.bf16.mxu0 0
    %1099 = vmatpush1.bf16.msra.mxu0 %v1096
    %1100 = vmatprep.subr.bf16.mxu0 0
    %1101 = vmatpush1.bf16.msra.mxu0 0
    %1102 = vmatprep.subr.bf16.mxu0 0
    %1103 = vmatpush1.bf16.msra.mxu0 0
    %1104 = vmatprep.subr.bf16.mxu0 0
    %1105 = vmatpush1.bf16.msra.mxu0 0
    %1106 = vmatprep.subr.bf16.mxu0 0
    %1107 = vmatpush1.bf16.msra.mxu0 0
    %1108 = vmatprep.subr.bf16.mxu0 0
    %1109 = vmatpush1.bf16.msra.mxu0 0
    %1110 = vmatprep.subr.bf16.mxu0 0
    %1111 = vmatpush1.bf16.msra.mxu0 0
    %1112 = vmatprep.subr.bf16.mxu0 0
    %1113 = vmatpush1.bf16.msra.mxu0 0
    %1114 = vmatprep.subr.bf16.mxu0 0
    %1115 = vmatpush1.bf16.msra.mxu0 0
    %1116 = vmatprep.subr.bf16.mxu0 0
    %1117 = vmatpush1.bf16.msra.mxu0 0
    %1118 = vmatprep.subr.bf16.mxu0 0
    %1119 = vmatpush1.bf16.msra.mxu0 0
    %1120 = vmatprep.subr.bf16.mxu0 0
    %1121 = vmatpush1.bf16.msra.mxu0 0
    %1122 = vmatprep.subr.bf16.mxu0 0
    %1123 = vmatpush1.bf16.msra.mxu0 0
    %1124 = vmatprep.subr.bf16.mxu0 0
    %1125 = vmatpush1.bf16.msra.mxu0 0
    %1126 = vmatprep.subr.bf16.mxu0 0
    %1127 = vmatpush1.bf16.msra.mxu0 0
    %1128 = vmatprep.subr.bf16.mxu0 0
    %1129 = vmatpush1.bf16.msra.mxu0 0
    %1130 = vmatprep.mubr.bf16.mxu0 0
    %1131 = vmatmul.mubr.bf16.gmra.mrb[0].mxu0 %v1093
    %v1132 = vpop.f32.mrb[0].mxu0
    %v1133 = vadd.f32 0.0, %v1132
    %v1134 = vpop.f32.mrb[0].mxu0
    %v1135 = vpop.f32.mrb[0].mxu0
    %v1136 = vpop.f32.mrb[0].mxu0
    %1137 = vdwg.mxu0
    %v1138 = vpack.c.bf16 %v1133, %v1085
    %1140 = vrot.lane.b32.xlu0 %v1138, 16
    %v1141 = vpop.permute.xlu0 %1140
    %vm1143 = vcmask 195712
    %1144 = vst.msk [vmem:[#allocation2] sm:$0xff] %vm1143, %v1141
    %1145 = vrot.lane.b32.xlu0 %v467, 104
    %v1146 = vpop.permute.xlu0 %1145
    %1147 = vrot.lane.b32.xlu0 %v469, 104
    %v1148 = vpop.permute.xlu0 %1147
    %v1150 = vsel %vm473, %v1146, 0
    %v1153 = vsel %vm473, %v1148, 0
    %1155 = vmatprep.subr.bf16.mxu0 0
    %1156 = vmatpush1.bf16.xpose.msra.mxu0 %v1153
    %1157 = vmatprep.subr.bf16.mxu0 0
    %1158 = vmatpush1.bf16.xpose.msra.mxu0 0
    %1159 = vmatprep.subr.bf16.mxu0 0
    %1160 = vmatpush1.bf16.xpose.msra.mxu0 0
    %1161 = vmatprep.subr.bf16.mxu0 0
    %1162 = vmatpush1.bf16.xpose.msra.mxu0 0
    %1163 = vmatprep.subr.bf16.mxu0 0
    %1164 = vmatpush1.bf16.xpose.msra.mxu0 0
    %1165 = vmatprep.subr.bf16.mxu0 0
    %1166 = vmatpush1.bf16.xpose.msra.mxu0 0
    %1167 = vmatprep.subr.bf16.mxu0 0
    %1168 = vmatpush1.bf16.xpose.msra.mxu0 0
    %1169 = vmatprep.subr.bf16.mxu0 0
    %1170 = vmatpush1.bf16.xpose.msra.mxu0 0
    %1171 = vmatprep.subr.bf16.mxu0 0
    %1172 = vmatpush1.bf16.xpose.msra.mxu0 0
    %1173 = vmatprep.subr.bf16.mxu0 0
    %1174 = vmatpush1.bf16.xpose.msra.mxu0 0
    %1175 = vmatprep.subr.bf16.mxu0 0
    %1176 = vmatpush1.bf16.xpose.msra.mxu0 0
    %1177 = vmatprep.subr.bf16.mxu0 0
    %1178 = vmatpush1.bf16.xpose.msra.mxu0 0
    %1179 = vmatprep.subr.bf16.mxu0 0
    %1180 = vmatpush1.bf16.xpose.msra.mxu0 0
    %1181 = vmatprep.subr.bf16.mxu0 0
    %1182 = vmatpush1.bf16.xpose.msra.mxu0 0
    %1183 = vmatprep.subr.bf16.mxu0 0
    %1184 = vmatpush1.bf16.xpose.msra.mxu0 0
    %1185 = vmatprep.subr.bf16.mxu0 0
    %1186 = vmatpush1.bf16.xpose.msra.mxu0 0
    %1187 = vmatprep.mubr.bf16.mxu0 0
    %1188 = vmatmul.mubr.bf16.gmra.mrb[0].mxu0 %v1150
    %v1189 = vpop.f32.mrb[0].mxu0
    %v1190 = vadd.f32 0.0, %v1189
    %v1191 = vpop.f32.mrb[0].mxu0
    %v1192 = vpop.f32.mrb[0].mxu0
    %v1193 = vpop.f32.mrb[0].mxu0
    %1194 = vdwg.mxu0
    %1195 = vrot.lane.b32.xlu0 %v468, 104
    %v1196 = vpop.permute.xlu0 %1195
    %1197 = vrot.lane.b32.xlu0 %v470, 104
    %v1198 = vpop.permute.xlu0 %1197
    %v1200 = vsel %vm473, %v1196, 0
    %v1203 = vsel %vm473, %v1198, 0
    %1205 = vmatprep.subr.bf16.mxu0 0
    %1206 = vmatpush1.bf16.xpose.msra.mxu0 %v1203
    %1207 = vmatprep.subr.bf16.mxu0 0
    %1208 = vmatpush1.bf16.xpose.msra.mxu0 0
    %1209 = vmatprep.subr.bf16.mxu0 0
    %1210 = vmatpush1.bf16.xpose.msra.mxu0 0
    %1211 = vmatprep.subr.bf16.mxu0 0
    %1212 = vmatpush1.bf16.xpose.msra.mxu0 0
    %1213 = vmatprep.subr.bf16.mxu0 0
    %1214 = vmatpush1.bf16.xpose.msra.mxu0 0
    %1215 = vmatprep.subr.bf16.mxu0 0
    %1216 = vmatpush1.bf16.xpose.msra.mxu0 0
    %1217 = vmatprep.subr.bf16.mxu0 0
    %1218 = vmatpush1.bf16.xpose.msra.mxu0 0
    %1219 = vmatprep.subr.bf16.mxu0 0
    %1220 = vmatpush1.bf16.xpose.msra.mxu0 0
    %1221 = vmatprep.subr.bf16.mxu0 0
    %1222 = vmatpush1.bf16.xpose.msra.mxu0 0
    %1223 = vmatprep.subr.bf16.mxu0 0
    %1224 = vmatpush1.bf16.xpose.msra.mxu0 0
    %1225 = vmatprep.subr.bf16.mxu0 0
    %1226 = vmatpush1.bf16.xpose.msra.mxu0 0
    %1227 = vmatprep.subr.bf16.mxu0 0
    %1228 = vmatpush1.bf16.xpose.msra.mxu0 0
    %1229 = vmatprep.subr.bf16.mxu0 0
    %1230 = vmatpush1.bf16.xpose.msra.mxu0 0
    %1231 = vmatprep.subr.bf16.mxu0 0
    %1232 = vmatpush1.bf16.xpose.msra.mxu0 0
    %1233 = vmatprep.subr.bf16.mxu0 0
    %1234 = vmatpush1.bf16.xpose.msra.mxu0 0
    %1235 = vmatprep.subr.bf16.mxu0 0
    %1236 = vmatpush1.bf16.xpose.msra.mxu0 0
    %1237 = vmatprep.mubr.bf16.mxu0 0
    %1238 = vmatmul.mubr.bf16.gmra.mrb[0].mxu0 %v1200
    %v1239 = vpop.f32.mrb[0].mxu0
    %v1240 = vadd.f32 0.0, %v1239
    %v1241 = vpop.f32.mrb[0].mxu0
    %v1242 = vpop.f32.mrb[0].mxu0
    %v1243 = vpop.f32.mrb[0].mxu0
    %1244 = vdwg.mxu0
    %v1245 = vsel %vm473, %v1190, -inf
    %1246 = vmax.xlane.f32.xlu0 %v1245
    %v1247 = vpop.xlane.xlu0 %1246
    %v1248 = vsel %vm473, %v1240, -inf
    %1249 = vmax.xlane.f32.xlu0 %v1248
    %v1250 = vpop.xlane.xlu0 %1249
    %v1251 = vsub.f32 %v1190, %v1247
    %v1252 = vsub.f32 %v1240, %v1250
    %v1253 = vmul.f32 %v1251, 1.442695
    %v1254 = vpow.pop %v1253
    %v1255 = vmul.f32 %v1252, 1.442695
    %v1256 = vpow.pop %v1255
    %v1257 = vsel %vm473, %v1254, 0.0
    %1258 = vadd.xlane.f32.xlu0 %v1257
    %v1259 = vpop.xlane.xlu0 %1258
    %v1260 = vsel %vm473, %v1256, 0.0
    %1261 = vadd.xlane.f32.xlu0 %v1260
    %v1262 = vpop.xlane.xlu0 %1261
    %v1263 = vrcp.pop %v1259
    %v1264 = vrcp.pop %v1262
    %v1265 = vmul.f32 %v1254, %v1263
    %v1266 = vmul.f32 %v1256, %v1264
    %v1267 = vpack.c.bf16 %v1265, %v1265
    %v1268 = vpack.c.bf16 %v1266, %v1266
    %1269 = vrot.lane.b32.xlu0 %v471, 104
    %v1270 = vpop.permute.xlu0 %1269
    %v1272 = vsel %vm473, %v1267, 0
    %v1275 = vsel %vm593, %v1270, 0
    %1277 = vmatprep.subr.bf16.mxu0 0
    %1278 = vmatpush1.bf16.msra.mxu0 %v1275
    %1279 = vmatprep.subr.bf16.mxu0 0
    %1280 = vmatpush1.bf16.msra.mxu0 0
    %1281 = vmatprep.subr.bf16.mxu0 0
    %1282 = vmatpush1.bf16.msra.mxu0 0
    %1283 = vmatprep.subr.bf16.mxu0 0
    %1284 = vmatpush1.bf16.msra.mxu0 0
    %1285 = vmatprep.subr.bf16.mxu0 0
    %1286 = vmatpush1.bf16.msra.mxu0 0
    %1287 = vmatprep.subr.bf16.mxu0 0
    %1288 = vmatpush1.bf16.msra.mxu0 0
    %1289 = vmatprep.subr.bf16.mxu0 0
    %1290 = vmatpush1.bf16.msra.mxu0 0
    %1291 = vmatprep.subr.bf16.mxu0 0
    %1292 = vmatpush1.bf16.msra.mxu0 0
    %1293 = vmatprep.subr.bf16.mxu0 0
    %1294 = vmatpush1.bf16.msra.mxu0 0
    %1295 = vmatprep.subr.bf16.mxu0 0
    %1296 = vmatpush1.bf16.msra.mxu0 0
    %1297 = vmatprep.subr.bf16.mxu0 0
    %1298 = vmatpush1.bf16.msra.mxu0 0
    %1299 = vmatprep.subr.bf16.mxu0 0
    %1300 = vmatpush1.bf16.msra.mxu0 0
    %1301 = vmatprep.subr.bf16.mxu0 0
    %1302 = vmatpush1.bf16.msra.mxu0 0
    %1303 = vmatprep.subr.bf16.mxu0 0
    %1304 = vmatpush1.bf16.msra.mxu0 0
    %1305 = vmatprep.subr.bf16.mxu0 0
    %1306 = vmatpush1.bf16.msra.mxu0 0
    %1307 = vmatprep.subr.bf16.mxu0 0
    %1308 = vmatpush1.bf16.msra.mxu0 0
    %1309 = vmatprep.mubr.bf16.mxu0 0
    %1310 = vmatmul.mubr.bf16.gmra.mrb[0].mxu0 %v1272
    %v1311 = vpop.f32.mrb[0].mxu0
    %v1312 = vadd.f32 0.0, %v1311
    %v1313 = vpop.f32.mrb[0].mxu0
    %v1314 = vpop.f32.mrb[0].mxu0
    %v1315 = vpop.f32.mrb[0].mxu0
    %1316 = vdwg.mxu0
    %1317 = vrot.lane.b32.xlu0 %v472, 104
    %v1318 = vpop.permute.xlu0 %1317
    %v1320 = vsel %vm473, %v1268, 0
    %v1323 = vsel %vm593, %v1318, 0
    %1325 = vmatprep.subr.bf16.mxu0 0
    %1326 = vmatpush1.bf16.msra.mxu0 %v1323
    %1327 = vmatprep.subr.bf16.mxu0 0
    %1328 = vmatpush1.bf16.msra.mxu0 0
    %1329 = vmatprep.subr.bf16.mxu0 0
    %1330 = vmatpush1.bf16.msra.mxu0 0
    %1331 = vmatprep.subr.bf16.mxu0 0
    %1332 = vmatpush1.bf16.msra.mxu0 0
    %1333 = vmatprep.subr.bf16.mxu0 0
    %1334 = vmatpush1.bf16.msra.mxu0 0
    %1335 = vmatprep.subr.bf16.mxu0 0
    %1336 = vmatpush1.bf16.msra.mxu0 0
    %1337 = vmatprep.subr.bf16.mxu0 0
    %1338 = vmatpush1.bf16.msra.mxu0 0
    %1339 = vmatprep.subr.bf16.mxu0 0
    %1340 = vmatpush1.bf16.msra.mxu0 0
    %1341 = vmatprep.subr.bf16.mxu0 0
    %1342 = vmatpush1.bf16.msra.mxu0 0
    %1343 = vmatprep.subr.bf16.mxu0 0
    %1344 = vmatpush1.bf16.msra.mxu0 0
    %1345 = vmatprep.subr.bf16.mxu0 0
    %1346 = vmatpush1.bf16.msra.mxu0 0
    %1347 = vmatprep.subr.bf16.mxu0 0
    %1348 = vmatpush1.bf16.msra.mxu0 0
    %1349 = vmatprep.subr.bf16.mxu0 0
    %1350 = vmatpush1.bf16.msra.mxu0 0
    %1351 = vmatprep.subr.bf16.mxu0 0
    %1352 = vmatpush1.bf16.msra.mxu0 0
    %1353 = vmatprep.subr.bf16.mxu0 0
    %1354 = vmatpush1.bf16.msra.mxu0 0
    %1355 = vmatprep.subr.bf16.mxu0 0
    %1356 = vmatpush1.bf16.msra.mxu0 0
    %1357 = vmatprep.mubr.bf16.mxu0 0
    %1358 = vmatmul.mubr.bf16.gmra.mrb[0].mxu0 %v1320
    %v1359 = vpop.f32.mrb[0].mxu0
    %v1360 = vadd.f32 0.0, %v1359
    %v1361 = vpop.f32.mrb[0].mxu0
    %v1362 = vpop.f32.mrb[0].mxu0
    %v1363 = vpop.f32.mrb[0].mxu0
    %1364 = vdwg.mxu0
    %v1365 = vpack.c.bf16 %v1360, %v1312
    %1367 = vrot.lane.b32.xlu0 %v1365, 24
    %v1368 = vpop.permute.xlu0 %1367
    %vm1370 = vcmask 261312
    %1371 = vst.msk [vmem:[#allocation2] sm:$0xff] %vm1370, %v1368
    %v1372 = vld [vmem:[#allocation2] sm:$0xff]
    %v1373 = vld [vmem:[#allocation15] sm:$0xf]
    %v1374 = vld [vmem:[#allocation15 + $0x4] sm:$0xf]
    %v1375 = vld [vmem:[#allocation15 + $0x8] sm:$0xf]
    %v1376 = vld [vmem:[#allocation15 + $0xc] sm:$0xf]
    %v1377 = vld [vmem:[#allocation17] sm:$0x1]
    %v1379 = vlaneseq
    %v1380 = vshrl.u32 %v1379, 7
    %v1381 = vsub.s32 0, %v1380
    %v1382 = vrot.slane %v1377, %v1381
    %v1388 = vunpack.c.l.b16 %v1373
    %v1389 = vunpack.c.l.b16 %v1374
    %v1390 = vunpack.c.l.b16 %v1375
    %v1391 = vunpack.c.l.b16 %v1376
    %v1392 = vpack.c.b16 %v1389, %v1388
    %v1393 = vpack.c.b16 %v1391, %v1390
    %v1397 = vsel %vm294, %v1372, 0
    %1399 = vmatprep.subr.bf16.mxu0 0
    %1400 = vmatpush1.bf16.msra.mxu0 %v1392
    %1401 = vmatprep.subr.bf16.mxu0 0
    %1402 = vmatpush1.bf16.msra.mxu0 %v1393
    %1403 = vmatprep.subr.bf16.mxu0 0
    %1404 = vmatpush1.bf16.msra.mxu0 0
    %1405 = vmatprep.subr.bf16.mxu0 0
    %1406 = vmatpush1.bf16.msra.mxu0 0
    %1407 = vmatprep.subr.bf16.mxu0 0
    %1408 = vmatpush1.bf16.msra.mxu0 0
    %1409 = vmatprep.subr.bf16.mxu0 0
    %1410 = vmatpush1.bf16.msra.mxu0 0
    %1411 = vmatprep.subr.bf16.mxu0 0
    %1412 = vmatpush1.bf16.msra.mxu0 0
    %1413 = vmatprep.subr.bf16.mxu0 0
    %1414 = vmatpush1.bf16.msra.mxu0 0
    %1415 = vmatprep.subr.bf16.mxu0 0
    %1416 = vmatpush1.bf16.msra.mxu0 0
    %1417 = vmatprep.subr.bf16.mxu0 0
    %1418 = vmatpush1.bf16.msra.mxu0 0
    %1419 = vmatprep.subr.bf16.mxu0 0
    %1420 = vmatpush1.bf16.msra.mxu0 0
    %1421 = vmatprep.subr.bf16.mxu0 0
    %1422 = vmatpush1.bf16.msra.mxu0 0
    %1423 = vmatprep.subr.bf16.mxu0 0
    %1424 = vmatpush1.bf16.msra.mxu0 0
    %1425 = vmatprep.subr.bf16.mxu0 0
    %1426 = vmatpush1.bf16.msra.mxu0 0
    %1427 = vmatprep.subr.bf16.mxu0 0
    %1428 = vmatpush1.bf16.msra.mxu0 0
    %1429 = vmatprep.subr.bf16.mxu0 0
    %1430 = vmatpush1.bf16.msra.mxu0 0
    %1431 = vmatprep.mubr.bf16.mxu0 0
    %1432 = vmatmul.mubr.bf16.gmra.mrb[0].mxu0 %v1397
    %v1433 = vpop.f32.mrb[0].mxu0
    %v1434 = vadd.f32 %v1382, %v1433
    %v1435 = vpop.f32.mrb[0].mxu0
    %v1436 = vpop.f32.mrb[0].mxu0
    %v1437 = vadd.f32 %v1382, %v1436
    %v1438 = vpop.f32.mrb[0].mxu0
    %1439 = vdwg.mxu0
    %v1440 = vadd.f32 %v268, %v1434
    %v1441 = vadd.f32 %v269, %v1437
    %v1442 = vsel %vm294, %v1440, 0.0
    %1443 = vadd.xlane.f32.xlu0 %v1442
    %v1444 = vpop.xlane.xlu0 %1443
    %v1445 = vsel %vm294, %v1441, 0.0
    %1446 = vadd.xlane.f32.xlu0 %v1445
    %v1447 = vpop.xlane.xlu0 %1446
    %v1448 = vrcp.pop 32.0
    %v1449 = vmul.f32 %v1444, %v1448
    %v1450 = vmul.f32 %v1447, %v1448
    %v1451 = vsub.f32 %v1440, %v1449
    %v1452 = vsub.f32 %v1441, %v1450
    %v1453 = vmul.f32 %v1451, %v1451
    %v1454 = vmul.f32 %v1452, %v1452
    %v1455 = vsel %vm294, %v1453, 0.0
    %1456 = vadd.xlane.f32.xlu0 %v1455
    %v1457 = vpop.xlane.xlu0 %1456
    %v1458 = vsel %vm294, %v1454, 0.0
    %1459 = vadd.xlane.f32.xlu0 %v1458
    %v1460 = vpop.xlane.xlu0 %1459
    %v1461 = vmul.f32 %v1457, %v1448
    %v1462 = vmul.f32 %v1460, %v1448
    %v1463 = vadd.f32 %v1461, 1e-05
    %v1464 = vadd.f32 %v1462, 1e-05
    %v1465 = vrsqrt.pop %v1463
    %v1466 = vrsqrt.pop %v1464
    %v1467 = vmul.f32 %v1451, %v1465
    %v1468 = vmul.f32 %v1452, %v1466
    %v1469 = vld [vmem:[#allocation18] sm:$0x1]
    %v1471 = vlaneseq
    %v1472 = vshrl.u32 %v1471, 7
    %v1473 = vsub.s32 0, %v1472
    %v1474 = vrot.slane %v1469, %v1473
    %v1476 = vmul.f32 %v1467, %v1474
    %v1477 = vmul.f32 %v1468, %v1474
    %v1478 = vld [vmem:[#allocation20] sm:$0x1]
    %v1480 = vlaneseq
    %v1481 = vshrl.u32 %v1480, 7
    %v1482 = vsub.s32 0, %v1481
    %v1483 = vrot.slane %v1478, %v1482
    %v1485 = vadd.f32 %v1476, %v1483
    %v1486 = vadd.f32 %v1477, %v1483
    %v1487 = vpack.c.bf16 %v1486, %v1485
    %v1488 = vld [vmem:[#allocation21] sm:$0xf]
    %v1489 = vld [vmem:[#allocation21 + $0x4] sm:$0xf]
    %v1490 = vld [vmem:[#allocation21 + $0x8] sm:$0xf]
    %v1491 = vld [vmem:[#allocation21 + $0xc] sm:$0xf]
    %v1492 = vld [vmem:[#allocation23] sm:$0x1]
    %v1494 = vlaneseq
    %v1495 = vshrl.u32 %v1494, 7
    %v1496 = vsub.s32 0, %v1495
    %v1497 = vrot.slane %v1492, %v1496
    %v1503 = vunpack.c.l.b16 %v1488
    %v1504 = vunpack.c.l.b16 %v1489
    %v1505 = vunpack.c.l.b16 %v1490
    %v1506 = vunpack.c.l.b16 %v1491
    %v1507 = vpack.c.b16 %v1504, %v1503
    %v1508 = vpack.c.b16 %v1506, %v1505
    %v1512 = vsel %vm294, %v1487, 0
    %1514 = vmatprep.subr.bf16.mxu0 0
    %1515 = vmatpush1.bf16.msra.mxu0 %v1507
    %1516 = vmatprep.subr.bf16.mxu0 0
    %1517 = vmatpush1.bf16.msra.mxu0 %v1508
    %1518 = vmatprep.subr.bf16.mxu0 0
    %1519 = vmatpush1.bf16.msra.mxu0 0
    %1520 = vmatprep.subr.bf16.mxu0 0
    %1521 = vmatpush1.bf16.msra.mxu0 0
    %1522 = vmatprep.subr.bf16.mxu0 0
    %1523 = vmatpush1.bf16.msra.mxu0 0
    %1524 = vmatprep.subr.bf16.mxu0 0
    %1525 = vmatpush1.bf16.msra.mxu0 0
    %1526 = vmatprep.subr.bf16.mxu0 0
    %1527 = vmatpush1.bf16.msra.mxu0 0
    %1528 = vmatprep.subr.bf16.mxu0 0
    %1529 = vmatpush1.bf16.msra.mxu0 0
    %1530 = vmatprep.subr.bf16.mxu0 0
    %1531 = vmatpush1.bf16.msra.mxu0 0
    %1532 = vmatprep.subr.bf16.mxu0 0
    %1533 = vmatpush1.bf16.msra.mxu0 0
    %1534 = vmatprep.subr.bf16.mxu0 0
    %1535 = vmatpush1.bf16.msra.mxu0 0
    %1536 = vmatprep.subr.bf16.mxu0 0
    %1537 = vmatpush1.bf16.msra.mxu0 0
    %1538 = vmatprep.subr.bf16.mxu0 0
    %1539 = vmatpush1.bf16.msra.mxu0 0
    %1540 = vmatprep.subr.bf16.mxu0 0
    %1541 = vmatpush1.bf16.msra.mxu0 0
    %1542 = vmatprep.subr.bf16.mxu0 0
    %1543 = vmatpush1.bf16.msra.mxu0 0
    %1544 = vmatprep.subr.bf16.mxu0 0
    %1545 = vmatpush1.bf16.msra.mxu0 0
    %1546 = vmatprep.mubr.bf16.mxu0 0
    %1547 = vmatmul.mubr.bf16.gmra.mrb[0].mxu0 %v1512
    %v1548 = vpop.f32.mrb[0].mxu0
    %v1549 = vadd.f32 %v1497, %v1548
    %v1550 = vpop.f32.mrb[0].mxu0
    %v1551 = vpop.f32.mrb[0].mxu0
    %v1552 = vadd.f32 %v1497, %v1551
    %v1553 = vpop.f32.mrb[0].mxu0
    %1554 = vdwg.mxu0
    %v1555 = vmax.f32 %v1549, 0.0
    %v1556 = vmax.f32 %v1552, 0.0
    %v1557 = vpack.c.bf16 %v1556, %v1555
    %v1558 = vld [vmem:[#allocation24] sm:$0xf]
    %v1559 = vld [vmem:[#allocation24 + $0x4] sm:$0xf]
    %v1560 = vld [vmem:[#allocation24 + $0x8] sm:$0xf]
    %v1561 = vld [vmem:[#allocation24 + $0xc] sm:$0xf]
    %v1562 = vld [vmem:[#allocation24 + $0x10] sm:$0xf]
    %v1563 = vld [vmem:[#allocation24 + $0x14] sm:$0xf]
    %v1564 = vld [vmem:[#allocation24 + $0x18] sm:$0xf]
    %v1565 = vld [vmem:[#allocation24 + $0x1c] sm:$0xf]
    %v1566 = vld [vmem:[#allocation26] sm:$0x1]
    %v1568 = vlaneseq
    %v1569 = vshrl.u32 %v1568, 7
    %v1570 = vsub.s32 0, %v1569
    %v1571 = vrot.slane %v1566, %v1570
    %v1581 = vunpack.c.l.b16 %v1558
    %v1582 = vunpack.c.l.b16 %v1559
    %v1583 = vunpack.c.l.b16 %v1560
    %v1584 = vunpack.c.l.b16 %v1561
    %v1585 = vunpack.c.l.b16 %v1562
    %v1586 = vunpack.c.l.b16 %v1563
    %v1587 = vunpack.c.l.b16 %v1564
    %v1588 = vunpack.c.l.b16 %v1565
    %v1589 = vpack.c.b16 %v1582, %v1581
    %v1590 = vpack.c.b16 %v1584, %v1583
    %v1591 = vpack.c.b16 %v1586, %v1585
    %v1592 = vpack.c.b16 %v1588, %v1587
    %vm1597 = vcmask 523264
    %v1599 = vsel %vm1597, %v1557, 0
    %1601 = vmatprep.subr.bf16.mxu0 0
    %1602 = vmatpush1.bf16.msra.mxu0 %v1589
    %1603 = vmatprep.subr.bf16.mxu0 0
    %1604 = vmatpush1.bf16.msra.mxu0 %v1590
    %1605 = vmatprep.subr.bf16.mxu0 0
    %1606 = vmatpush1.bf16.msra.mxu0 %v1591
    %1607 = vmatprep.subr.bf16.mxu0 0
    %1608 = vmatpush1.bf16.msra.mxu0 %v1592
    %1609 = vmatprep.subr.bf16.mxu0 0
    %1610 = vmatpush1.bf16.msra.mxu0 0
    %1611 = vmatprep.subr.bf16.mxu0 0
    %1612 = vmatpush1.bf16.msra.mxu0 0
    %1613 = vmatprep.subr.bf16.mxu0 0
    %1614 = vmatpush1.bf16.msra.mxu0 0
    %1615 = vmatprep.subr.bf16.mxu0 0
    %1616 = vmatpush1.bf16.msra.mxu0 0
    %1617 = vmatprep.subr.bf16.mxu0 0
    %1618 = vmatpush1.bf16.msra.mxu0 0
    %1619 = vmatprep.subr.bf16.mxu0 0
    %1620 = vmatpush1.bf16.msra.mxu0 0
    %1621 = vmatprep.subr.bf16.mxu0 0
    %1622 = vmatpush1.bf16.msra.mxu0 0
    %1623 = vmatprep.subr.bf16.mxu0 0
    %1624 = vmatpush1.bf16.msra.mxu0 0
    %1625 = vmatprep.subr.bf16.mxu0 0
    %1626 = vmatpush1.bf16.msra.mxu0 0
    %1627 = vmatprep.subr.bf16.mxu0 0
    %1628 = vmatpush1.bf16.msra.mxu0 0
    %1629 = vmatprep.subr.bf16.mxu0 0
    %1630 = vmatpush1.bf16.msra.mxu0 0
    %1631 = vmatprep.subr.bf16.mxu0 0
    %1632 = vmatpush1.bf16.msra.mxu0 0
    %1633 = vmatprep.mubr.bf16.mxu0 0
    %1634 = vmatmul.mubr.bf16.gmra.mrb[0].mxu0 %v1599
    %v1635 = vpop.f32.mrb[0].mxu0
    %v1636 = vadd.f32 %v1571, %v1635
    %v1637 = vpop.f32.mrb[0].mxu0
    %v1638 = vpop.f32.mrb[0].mxu0
    %v1639 = vadd.f32 %v1571, %v1638
    %v1640 = vpop.f32.mrb[0].mxu0
    %1641 = vdwg.mxu0
    %v1642 = vadd.f32 %v1485, %v1636
    %v1643 = vadd.f32 %v1486, %v1639
    %v1644 = vsel %vm294, %v1642, 0.0
    %1645 = vadd.xlane.f32.xlu0 %v1644
    %v1646 = vpop.xlane.xlu0 %1645
    %v1647 = vsel %vm294, %v1643, 0.0
    %1648 = vadd.xlane.f32.xlu0 %v1647
    %v1649 = vpop.xlane.xlu0 %1648
    %v1650 = vmul.f32 %v1646, %v1448
    %v1651 = vmul.f32 %v1649, %v1448
    %v1652 = vsub.f32 %v1642, %v1650
    %v1653 = vsub.f32 %v1643, %v1651
    %v1654 = vmul.f32 %v1652, %v1652
    %v1655 = vmul.f32 %v1653, %v1653
    %v1656 = vsel %vm294, %v1654, 0.0
    %1657 = vadd.xlane.f32.xlu0 %v1656
    %v1658 = vpop.xlane.xlu0 %1657
    %v1659 = vsel %vm294, %v1655, 0.0
    %1660 = vadd.xlane.f32.xlu0 %v1659
    %v1661 = vpop.xlane.xlu0 %1660
    %v1662 = vmul.f32 %v1658, %v1448
    %v1663 = vmul.f32 %v1661, %v1448
    %v1664 = vadd.f32 %v1662, 1e-05
    %v1665 = vadd.f32 %v1663, 1e-05
    %v1666 = vrsqrt.pop %v1664
    %v1667 = vrsqrt.pop %v1665
    %v1668 = vmul.f32 %v1652, %v1666
    %v1669 = vmul.f32 %v1653, %v1667
    %v1670 = vld [vmem:[#allocation27] sm:$0x1]
    %v1672 = vlaneseq
    %v1673 = vshrl.u32 %v1672, 7
    %v1674 = vsub.s32 0, %v1673
    %v1675 = vrot.slane %v1670, %v1674
    %v1677 = vmul.f32 %v1668, %v1675
    %v1678 = vmul.f32 %v1669, %v1675
    %v1679 = vld [vmem:[#allocation29] sm:$0x1]
    %v1681 = vlaneseq
    %v1682 = vshrl.u32 %v1681, 7
    %v1683 = vsub.s32 0, %v1682
    %v1684 = vrot.slane %v1679, %v1683
    %v1686 = vadd.f32 %v1677, %v1684
    %v1687 = vadd.f32 %v1678, %v1684
    %1688 = vst.msk [vmem:[#allocation30] sm:$0xff] %vm294, %v1686
    %1689 = vst.msk [vmem:[#allocation30 + $0x8] sm:$0xff] %vm294, %v1687
    // Predicated region
    $region138: #{tpu_custom_call.1} parent=1 // pred_check
      _
    $region139: #{tpu_custom_call.1} parent=1 // pred_check_branch
      %1691 = sbr.rel (0) target = $region141
    $region140: #{tpu_custom_call.1} parent=1 // pred_region
      %s1693 = ssub.s32 256, 256
      %1694 = vsyncadd [#allocation5], %s1693
      %s1695 = sshll.u32 [#allocation30], 4
      %s1696 = int_to_ptr.vmem [resolvable:$true] %s1695
      %1701 = dma.vmem_to_hbm [thread:$0]  %s1696, 256, %s17, [#allocation5], 128, 128, 8
    $region141: #{tpu_custom_call.1} parent=1 // pred_fallthru
      _
    // Predicated region
    $region142: #{tpu_custom_call.1} parent=1 // pred_check
      _
    $region143: #{tpu_custom_call.1} parent=1 // pred_check_branch
      %1703 = sbr.rel (0) target = $region145
    $region144: #{tpu_custom_call.1} parent=1 // pred_region
      %1704 = dma.done [#allocation5], 256
    $region145: #{tpu_custom_call.1} parent=1 // pred_fallthru
      _
    %1705 = vsyncpa [#allocation4], 1
    %1706 = vsyncpa [#allocation7], 1
    %1707 = vsyncpa [#allocation10], 1
    %1708 = vsyncpa [#allocation13], 1
    %1709 = vsyncpa [#allocation16], 1
    %1710 = vsyncpa [#allocation19], 1
    %1711 = vsyncpa [#allocation22], 1
    %1712 = vsyncpa [#allocation25], 1
    %1713 = vsyncpa [#allocation28], 1
    %1714 = vsyncpa [#allocation5], 1

</llo_original>
